<compile_context>
chip_gen: v6e
topology: v6e:2x2x1
jax: 0.10.0
libtpu: 0.0.40
codegen_flags: <defaults>
</compile_context>

<pallas_src>
import functools
import numpy as np
import jax
import jax.numpy as jnp
from jax import lax
from jax.experimental import pallas as pl
from jax.experimental.pallas import tpu as pltpu


# 3x3 coarse-block neighbourhood order; shared by the kernel and the
# tap-matrix construction.
_OFFSETS = tuple((qy, qx) for qy in (-1, 0, 1) for qx in (-1, 0, 1))


def _round_up(x, m):
    return -(-x // m) * m


def _phase_selector(n_phase):
    """S[o, p_in, p_out, ky, kx]: folds 5x5 depthwise-conv taps into
    per-offset (phase_in, phase_out) matrices; `o` runs over _OFFSETS."""
    npx = n_phase * n_phase
    sel = np.zeros((9, npx, npx, 5, 5), np.float32)
    for o, (qy, qx) in enumerate(_OFFSETS):
        for ri in range(n_phase):
            for si in range(n_phase):
                for ro in range(n_phase):
                    for so in range(n_phase):
                        dy = n_phase * qy + ri - ro
                        dx = n_phase * qx + si - so
                        if -2 <= dy <= 2 and -2 <= dx <= 2:
                            sel[o, ri * n_phase + si, ro * n_phase + so,
                                dy + 2, dx + 2] = 1.0
    return sel


def _make_kernel(NB, blk_h, W2, C):
    L1, L2 = 16 * C, 4 * C
    NG = blk_h + 1                    # coarse-row groups / image (+1 zero grp)
    STRIDE = NG * W2                  # slab rows per image
    R_OUT = NB * STRIDE               # conv-output slab rows per grid step
    OFF = _round_up(W2 + 1, 8)        # 8-aligned top guard (up-left halo)
    R_TOT = _round_up(OFF + R_OUT + W2 + 1, 8)
    f32 = jnp.float32

    def kernel(ph_ref, hc_ref, mask_ref, m1_ref, m2_ref, bc_ref,
               out_ref, pad1, pad2):
        # Guard rows (top + tail) must be zero every step: scratch is
        # per-core and uninitialised; the slab interior is rewritten below.
        pad1[0:OFF, :] = jnp.zeros((OFF, L1), f32)
        pad1[OFF + R_OUT:R_TOT, :] = jnp.zeros((R_TOT - OFF - R_OUT, L1), f32)
        pad2[0:OFF, :] = jnp.zeros((OFF, L2), f32)
        pad2[OFF + R_OUT:R_TOT, :] = jnp.zeros((R_TOT - OFF - R_OUT, L2), f32)

        b1f = bc_ref[:, 0:L1]                    # (1, L1) stage-1 bias
        b2f = bc_ref[:, L1:L1 + L2]              # (1, L2) stage-2 bias

        # ---- stage 1: copy the NB-image slab (aligned contiguous stores) ---
        for n in range(NB):
            pad1[OFF + n * STRIDE:OFF + (n + 1) * STRIDE, :] = ph_ref[n]

        # depthwise 5x5 conv == 9 MXU matmuls over the whole stacked slab
        acc1 = None
        for o, (qy, qx) in enumerate(_OFFSETS):
            s0 = OFF + qy * W2 + qx
            part = jnp.dot(pad1[s0:s0 + R_OUT, :], m1_ref[o],
                           preferred_element_type=f32)
            acc1 = part if acc1 is None else acc1 + part
        y1 = jnp.maximum(acc1 + b1f, 0.0)        # (R_OUT, L1)

        # maxpool 2x2: tap columns pre-permuted -> max of 4 lane quarters
        p1 = jnp.maximum(jnp.maximum(y1[:, 0:L2], y1[:, L2:2 * L2]),
                         jnp.maximum(y1[:, 2 * L2:3 * L2],
                                     y1[:, 3 * L2:4 * L2]))
        # zero junk rows (pad columns / trailing group) so stage-2 halos are 0
        maskf = jnp.concatenate([mask_ref[0]] * NB, axis=0)    # (R_OUT, 1)
        pad2[OFF:OFF + R_OUT, :] = p1 * maskf

        # ---- stage 2: same structure at half resolution ---------------------
        acc2 = None
        for o, (qy, qx) in enumerate(_OFFSETS):
            s0 = OFF + qy * W2 + qx
            part = jnp.dot(pad2[s0:s0 + R_OUT, :], m2_ref[o],
                           preferred_element_type=f32)
            acc2 = part if acc2 is None else acc2 + part
        y2 = jnp.maximum(acc2 + b2f, 0.0)        # (R_OUT, L2)

        # maxpool 2x2 -> one value per coarse block per channel
        p2 = jnp.maximum(jnp.maximum(y2[:, 0:C], y2[:, C:2 * C]),
                         jnp.maximum(y2[:, 2 * C:3 * C], y2[:, 3 * C:4 * C]))

        # per-image hc-weighted reduction: S[n, c] = sum_rows hc * p2
        # (hc is zero on junk rows, so garbage rows contribute nothing)
        rows = []
        for n in range(NB):
            seg = p2[n * STRIDE:(n + 1) * STRIDE, :] * hc_ref[n]
            rows.append(jnp.sum(seg, axis=0, keepdims=True))
        S = jnp.concatenate(rows, axis=0) if NB > 1 else rows[0]   # (NB, C)
        out_ref[0] = jnp.concatenate(
            [S, jnp.zeros((NB, 128 - C), f32)], axis=1)            # lane-dense

    return kernel, OFF, R_TOT


def attention_model_pallas(wrf, h, c, params, *, batch_block=None):
    """wrf: (N, C, H, W); h, c: (N, 128, H//4, W//4) -- PyTorch NCHW layout."""
    w1, b1, w2, b2, w3, b3, whw, bhw = params
    f32 = jnp.float32
    N, C, H, W = wrf.shape
    assert H % 4 == 0 and W % 4 == 0
    blk_h, blk_w = H // 4, W // 4
    assert h.shape == (N, 128, blk_h, blk_w) and c.shape == h.shape
    L1, L2 = 16 * C, 4 * C
    assert L1 + L2 <= 128, "constant packing assumes the small-C regime"
    W2 = _round_up(blk_w + 2, 8)      # halo/pad columns per coarse row
    NG = blk_h + 1
    STRIDE = NG * W2

    # Batch block: keep >= 2 grid steps when possible (v7x megacore), cap at 8
    # and pad N so an awkward N never degrades to tiny per-step work.
    if batch_block is None:
        batch_block = max(1, min(8, -(-N // 2)))
    NB = max(1, min(batch_block, N))
    G = -(-N // NB)
    Npad = G * NB

    # ---- activations: phase-fused wrf (pad columns / trailing group = 0) ---
    # ph[n, a*W2 + b, (4r+s)*C + c] = wrf[n, c, 4a+r, 4b+s]
    phd = (wrf.astype(f32).transpose(0, 2, 3, 1)
              .reshape(N, blk_h, 4, blk_w, 4, C)
              .transpose(0, 1, 3, 2, 4, 5)
              .reshape(N, blk_h, blk_w, L1))
    ph = jnp.pad(phd, ((0, Npad - N), (0, 1), (0, W2 - blk_w), (0, 0)))
    ph = ph.reshape(Npad, STRIDE, L1)

    # ---- att_hc (1x1 conv over concat(h, c)) computed in the wrapper --------
    wh = whw[0, :, 0, 0].astype(f32)
    hcmap = (jnp.einsum('nkab,k->nab', h.astype(f32), wh[:128])
             + jnp.einsum('nkab,k->nab', c.astype(f32), wh[128:])
             + bhw[0].astype(f32))                          # (N, blk_h, blk_w)
    sum_hc = jnp.sum(hcmap, axis=(1, 2))                    # (N,)
    hc = jnp.pad(hcmap, ((0, Npad - N), (0, 1), (0, W2 - blk_w)))
    hc = hc.reshape(Npad, STRIDE, 1)

    # Valid-row mask (same for every image): 1 on real coarse blocks, 0 on pads.
    mask = jnp.zeros((NG, W2), f32).at[:blk_h, :blk_w].set(1.0)
    mask = mask.reshape(1, STRIDE, 1)

    # ---- constants: fold depthwise 5x5 taps into per-offset phase matrices --
    eye = jnp.eye(C, dtype=f32)
    m1 = jnp.einsum('opqyx,cyx->opqc', jnp.asarray(_phase_selector(4)),
                    w1[:, 0].astype(f32))
    m1 = jnp.einsum('opqc,ec->opeqc', m1, eye).reshape(9, L1, L1)
    # Permute output columns so the 4 max-pool operands of every pooled lane
    # sit in the 4 contiguous lane quarters (pooled order = (rho*2+sig)*C + c).
    perm = []
    for j in range(4):
        r1, s1 = j // 2, j % 2
        for rho in range(2):
            for sig in range(2):
                q = (2 * rho + r1) * 4 + (2 * sig + s1)
                for ch in range(C):
                    perm.append(q * C + ch)
    m1 = m1[:, :, np.asarray(perm)]

    m2 = jnp.einsum('opqyx,cyx->opqc', jnp.asarray(_phase_selector(2)),
                    w2[:, 0].astype(f32))
    m2 = jnp.einsum('opqc,ec->opeqc', m2, eye).reshape(9, L2, L2)

    bconst = jnp.zeros((1, 128), f32)
    bconst = bconst.at[0, :L1].set(jnp.tile(b1.astype(f32), 16))
    bconst = bconst.at[0, L1:L1 + L2].set(jnp.tile(b2.astype(f32), 4))

    kernel, _OFF, R_TOT = _make_kernel(NB, blk_h, W2, C)

    S = pl.pallas_call(
        kernel,
        out_shape=jax.ShapeDtypeStruct((G, NB, 128), f32),
        grid_spec=pltpu.PrefetchScalarGridSpec(
            num_scalar_prefetch=0,
            grid=(G,),
            in_specs=[
                pl.BlockSpec((NB, STRIDE, L1), lambda g: (g, 0, 0)),   # ph
                pl.BlockSpec((NB, STRIDE, 1), lambda g: (g, 0, 0)),    # hc
                pl.BlockSpec((1, STRIDE, 1), lambda g: (0, 0, 0)),     # mask
                pl.BlockSpec((9, L1, L1), lambda g: (0, 0, 0)),        # m1
                pl.BlockSpec((9, L2, L2), lambda g: (0, 0, 0)),        # m2
                pl.BlockSpec((1, 128), lambda g: (0, 0)),              # biases
            ],
            out_specs=pl.BlockSpec((1, NB, 128), lambda g: (g, 0, 0)),
            scratch_shapes=[pltpu.VMEM((R_TOT, L1), f32),
                            pltpu.VMEM((R_TOT, L2), f32)],
        ),
        compiler_params=pltpu.CompilerParams(
            dimension_semantics=("parallel",)),
    )(ph, hc, mask, m1, m2, bconst)

    S = S.reshape(Npad, 128)[:N, :C]                        # (N, C)

    # ---- finish in the wrapper: 1x1 depthwise conv, softmax, rescale --------
    w3v = w3[:, 0, 0, 0].astype(f32)
    b3v = b3.astype(f32)
    e = S * (w3v / blk_w)[None, :] + sum_hc[:, None] * (b3v / blk_w)[None, :]
    alpha = jax.nn.softmax(e, axis=1)                       # (N, C)
    return (wrf.astype(f32) * alpha[:, :, None, None]).astype(wrf.dtype)


def make_params(key, channels):
    ks = jax.random.split(key, 8)

    def init(k, shape, scale=0.1):
        return scale * jax.random.normal(k, shape, dtype=jnp.float32)

    return (init(ks[0], (channels, 1, 5, 5)), init(ks[1], (channels,)),
            init(ks[2], (channels, 1, 5, 5)), init(ks[3], (channels,)),
            init(ks[4], (channels, 1, 1, 1)), init(ks[5], (channels,)),
            init(ks[6], (1, 256, 1, 1)), init(ks[7], (1,)))


def attention_model_reference(wrf, h, c, params):
    """Pure-JAX reference matching the PyTorch module exactly (NCHW)."""
    w1, b1, w2, b2, w3, b3, whw, bhw = params
    C = wrf.shape[1]

    def dwconv5(x, w, b):
        y = lax.conv_general_dilated(
            x, w, window_strides=(1, 1), padding=((2, 2), (2, 2)),
            feature_group_count=C,
            dimension_numbers=('NCHW', 'OIHW', 'NCHW'))
        return y + b[None, :, None, None]

    def maxpool2(x):
        return lax.reduce_window(x, -jnp.inf, lax.max,
                                 (1, 1, 2, 2), (1, 1, 2, 2), 'VALID')

    y = maxpool2(jax.nn.relu(dwconv5(wrf, w1, b1)))
    y = maxpool2(jax.nn.relu(dwconv5(y, w2, b2)))
    att_wrf = y * w3[:, 0, 0, 0][None, :, None, None] + b3[None, :, None, None]
    hc = jnp.concatenate([h, c], axis=1)
    att_hc = jnp.einsum('nkhw,k->nhw', hc, whw[0, :, 0, 0])[:, None] + bhw[0]
    att = att_hc * att_wrf
    e = jnp.sum(att, axis=(2, 3), keepdims=True) / att_wrf.shape[3]
    alpha = jax.nn.softmax(e, axis=1)
    return wrf * alpha


if __name__ == "__main__":
    key = jax.random.PRNGKey(0)
    N, C, H, W = 2, 4, 16, 16
    k1, k2, k3, k4 = jax.random.split(key, 4)
    wrf = jax.random.normal(k1, (N, C, H, W), dtype=jnp.float32)
    h = jax.random.normal(k2, (N, 128, H // 4, W // 4), dtype=jnp.float32)
    c = jax.random.normal(k3, (N, 128, H // 4, W // 4), dtype=jnp.float32)
    params = make_params(k4, C)

    run = jax.jit(attention_model_pallas)
    out = jax.block_until_ready(run(wrf, h, c, params))
    ref = jax.block_until_ready(attention_model_reference(wrf, h, c, params))

    # Both the kernel matmuls and the XLA reference conv run f32 via MXU
    # bf16-pass emulation at default precision; allow for that noise while
    # still catching any real layout / halo / pooling bug (those are O(0.1+)).
    np.testing.assert_allclose(np.asarray(out), np.asarray(ref),
                               rtol=2e-2, atol=2e-2)
    print("KERNEL_OK")
</pallas_src>

<mosaic_0001>
module attributes {stable_mosaic.version = 11 : i64} {
  func.func @kernel(%arg0: i32, %arg1: memref<1x40x64xf32, #tpu.memory_space<vmem>>, %arg2: memref<1x40x1xf32, #tpu.memory_space<vmem>>, %arg3: memref<1x40x1xf32, #tpu.memory_space<vmem>>, %arg4: memref<9x64x64xf32, #tpu.memory_space<vmem>>, %arg5: memref<9x16x16xf32, #tpu.memory_space<vmem>>, %arg6: memref<1x128xf32, #tpu.memory_space<vmem>>, %arg7: memref<1x1x128xf32, #tpu.memory_space<vmem>>, %arg8: memref<72x64xf32, #tpu.memory_space<vmem>>, %arg9: memref<72x16xf32, #tpu.memory_space<vmem>>) attributes {dimension_semantics = [#tpu.dimension_semantics<parallel>], iteration_bounds = array<i64: 2>, scalar_prefetch = 0 : i64, scratch_operands = 2 : i64, tpu.core_type = #tpu.core_type<tc>, window_params = [{transform_indices = @transform_0, window_bounds = array<i64: 1, 40, 64>}, {transform_indices = @transform_1, window_bounds = array<i64: 1, 40, 1>}, {pipeline_mode = #tpu.pipeline_mode<synchronous>, transform_indices = @transform_2, window_bounds = array<i64: 1, 40, 1>}, {pipeline_mode = #tpu.pipeline_mode<synchronous>, transform_indices = @transform_3, window_bounds = array<i64: 9, 64, 64>}, {pipeline_mode = #tpu.pipeline_mode<synchronous>, transform_indices = @transform_4, window_bounds = array<i64: 9, 16, 16>}, {pipeline_mode = #tpu.pipeline_mode<synchronous>, transform_indices = @transform_5, window_bounds = array<i64: 1, 128>}, {transform_indices = @transform_6, window_bounds = array<i64: 1, 1, 128>}]} {
    %cst = arith.constant 0.000000e+00 : f32
    %0 = vector.broadcast %cst : f32 to vector<16x64xf32>
    %c0 = arith.constant 0 : index
    %c0_0 = arith.constant 0 : index
    %1 = vector.load %arg8[%c0, %c0_0] : memref<72x64xf32, #tpu.memory_space<vmem>>, vector<16x64xf32>
    tpu.vector_store %arg8[%c0, %c0_0], %0 {strides = array<i32>} : memref<72x64xf32, #tpu.memory_space<vmem>>, vector<16x64xf32>,
    %cst_1 = arith.constant 0.000000e+00 : f32
    %2 = vector.broadcast %cst_1 : f32 to vector<16x64xf32>
    %c56 = arith.constant 56 : index
    %c0_2 = arith.constant 0 : index
    %3 = vector.load %arg8[%c56, %c0_2] : memref<72x64xf32, #tpu.memory_space<vmem>>, vector<16x64xf32>
    tpu.vector_store %arg8[%c56, %c0_2], %2 {strides = array<i32>} : memref<72x64xf32, #tpu.memory_space<vmem>>, vector<16x64xf32>,
    %cst_3 = arith.constant 0.000000e+00 : f32
    %4 = vector.broadcast %cst_3 : f32 to vector<16x16xf32>
    %c0_4 = arith.constant 0 : index
    %c0_5 = arith.constant 0 : index
    %5 = vector.load %arg9[%c0_4, %c0_5] : memref<72x16xf32, #tpu.memory_space<vmem>>, vector<16x16xf32>
    tpu.vector_store %arg9[%c0_4, %c0_5], %4 {strides = array<i32>} : memref<72x16xf32, #tpu.memory_space<vmem>>, vector<16x16xf32>,
    %cst_6 = arith.constant 0.000000e+00 : f32
    %6 = vector.broadcast %cst_6 : f32 to vector<16x16xf32>
    %c56_7 = arith.constant 56 : index
    %c0_8 = arith.constant 0 : index
    %7 = vector.load %arg9[%c56_7, %c0_8] : memref<72x16xf32, #tpu.memory_space<vmem>>, vector<16x16xf32>
    tpu.vector_store %arg9[%c56_7, %c0_8], %6 {strides = array<i32>} : memref<72x16xf32, #tpu.memory_space<vmem>>, vector<16x16xf32>,
    %c0_9 = arith.constant 0 : index
    %c0_10 = arith.constant 0 : index
    %8 = vector.load %arg6[%c0_9, %c0_10] : memref<1x128xf32, #tpu.memory_space<vmem>>, vector<1x64xf32>
    %c0_11 = arith.constant 0 : index
    %c64 = arith.constant 64 : index
    %9 = vector.load %arg6[%c0_11, %c64] : memref<1x128xf32, #tpu.memory_space<vmem>>, vector<1x16xf32>
    %c0_12 = arith.constant 0 : index
    %c0_13 = arith.constant 0 : index
    %c0_14 = arith.constant 0 : index
    %10 = vector.load %arg1[%c0_12, %c0_13, %c0_14] : memref<1x40x64xf32, #tpu.memory_space<vmem>>, vector<1x40x64xf32>
    %11 = vector.shape_cast %10 : vector<1x40x64xf32> to vector<40x64xf32>
    %c16 = arith.constant 16 : index
    %c0_15 = arith.constant 0 : index
    %12 = vector.load %arg8[%c16, %c0_15] : memref<72x64xf32, #tpu.memory_space<vmem>>, vector<40x64xf32>
    tpu.vector_store %arg8[%c16, %c0_15], %11 {strides = array<i32>} : memref<72x64xf32, #tpu.memory_space<vmem>>, vector<40x64xf32>,
    %c7 = arith.constant 7 : index
    %c0_16 = arith.constant 0 : index
    %13 = vector.load %arg8[%c7, %c0_16] : memref<72x64xf32, #tpu.memory_space<vmem>>, vector<40x64xf32>
    %c0_17 = arith.constant 0 : index
    %c0_18 = arith.constant 0 : index
    %c0_19 = arith.constant 0 : index
    %14 = vector.load %arg4[%c0_17, %c0_18, %c0_19] : memref<9x64x64xf32, #tpu.memory_space<vmem>>, vector<1x64x64xf32>
    %15 = vector.shape_cast %14 : vector<1x64x64xf32> to vector<64x64xf32>
    %cst_20 = arith.constant dense<0.000000e+00> : vector<40x64xf32>
    %16 = tpu.matmul %13, %15, %cst_20 {dimension_numbers = #tpu.dot_dimension_numbers<[1], [0], [0], [1], [0, 0, 1, 1], [], []>} : vector<40x64xf32>, vector<64x64xf32>, vector<40x64xf32> -> vector<40x64xf32>
    %c8 = arith.constant 8 : index
    %c0_21 = arith.constant 0 : index
    %17 = vector.load %arg8[%c8, %c0_21] : memref<72x64xf32, #tpu.memory_space<vmem>>, vector<40x64xf32>
    %c1 = arith.constant 1 : index
    %c0_22 = arith.constant 0 : index
    %c0_23 = arith.constant 0 : index
    %18 = vector.load %arg4[%c1, %c0_22, %c0_23] : memref<9x64x64xf32, #tpu.memory_space<vmem>>, vector<1x64x64xf32>
    %19 = vector.shape_cast %18 : vector<1x64x64xf32> to vector<64x64xf32>
    %cst_24 = arith.constant dense<0.000000e+00> : vector<40x64xf32>
    %20 = tpu.matmul %17, %19, %cst_24 {dimension_numbers = #tpu.dot_dimension_numbers<[1], [0], [0], [1], [0, 0, 1, 1], [], []>} : vector<40x64xf32>, vector<64x64xf32>, vector<40x64xf32> -> vector<40x64xf32>
    %21 = arith.addf %16, %20 : vector<40x64xf32>
    %c9 = arith.constant 9 : index
    %c0_25 = arith.constant 0 : index
    %22 = vector.load %arg8[%c9, %c0_25] : memref<72x64xf32, #tpu.memory_space<vmem>>, vector<40x64xf32>
    %c2 = arith.constant 2 : index
    %c0_26 = arith.constant 0 : index
    %c0_27 = arith.constant 0 : index
    %23 = vector.load %arg4[%c2, %c0_26, %c0_27] : memref<9x64x64xf32, #tpu.memory_space<vmem>>, vector<1x64x64xf32>
    %24 = vector.shape_cast %23 : vector<1x64x64xf32> to vector<64x64xf32>
    %cst_28 = arith.constant dense<0.000000e+00> : vector<40x64xf32>
    %25 = tpu.matmul %22, %24, %cst_28 {dimension_numbers = #tpu.dot_dimension_numbers<[1], [0], [0], [1], [0, 0, 1, 1], [], []>} : vector<40x64xf32>, vector<64x64xf32>, vector<40x64xf32> -> vector<40x64xf32>
    %26 = arith.addf %21, %25 : vector<40x64xf32>
    %c15 = arith.constant 15 : index
    %c0_29 = arith.constant 0 : index
    %27 = vector.load %arg8[%c15, %c0_29] : memref<72x64xf32, #tpu.memory_space<vmem>>, vector<40x64xf32>
    %c3 = arith.constant 3 : index
    %c0_30 = arith.constant 0 : index
    %c0_31 = arith.constant 0 : index
    %28 = vector.load %arg4[%c3, %c0_30, %c0_31] : memref<9x64x64xf32, #tpu.memory_space<vmem>>, vector<1x64x64xf32>
    %29 = vector.shape_cast %28 : vector<1x64x64xf32> to vector<64x64xf32>
    %cst_32 = arith.constant dense<0.000000e+00> : vector<40x64xf32>
    %30 = tpu.matmul %27, %29, %cst_32 {dimension_numbers = #tpu.dot_dimension_numbers<[1], [0], [0], [1], [0, 0, 1, 1], [], []>} : vector<40x64xf32>, vector<64x64xf32>, vector<40x64xf32> -> vector<40x64xf32>
    %31 = arith.addf %26, %30 : vector<40x64xf32>
    %c16_33 = arith.constant 16 : index
    %c0_34 = arith.constant 0 : index
    %32 = vector.load %arg8[%c16_33, %c0_34] : memref<72x64xf32, #tpu.memory_space<vmem>>, vector<40x64xf32>
    %c4 = arith.constant 4 : index
    %c0_35 = arith.constant 0 : index
    %c0_36 = arith.constant 0 : index
    %33 = vector.load %arg4[%c4, %c0_35, %c0_36] : memref<9x64x64xf32, #tpu.memory_space<vmem>>, vector<1x64x64xf32>
    %34 = vector.shape_cast %33 : vector<1x64x64xf32> to vector<64x64xf32>
    %cst_37 = arith.constant dense<0.000000e+00> : vector<40x64xf32>
    %35 = tpu.matmul %32, %34, %cst_37 {dimension_numbers = #tpu.dot_dimension_numbers<[1], [0], [0], [1], [0, 0, 1, 1], [], []>} : vector<40x64xf32>, vector<64x64xf32>, vector<40x64xf32> -> vector<40x64xf32>
    %36 = arith.addf %31, %35 : vector<40x64xf32>
    %c17 = arith.constant 17 : index
    %c0_38 = arith.constant 0 : index
    %37 = vector.load %arg8[%c17, %c0_38] : memref<72x64xf32, #tpu.memory_space<vmem>>, vector<40x64xf32>
    %c5 = arith.constant 5 : index
    %c0_39 = arith.constant 0 : index
    %c0_40 = arith.constant 0 : index
    %38 = vector.load %arg4[%c5, %c0_39, %c0_40] : memref<9x64x64xf32, #tpu.memory_space<vmem>>, vector<1x64x64xf32>
    %39 = vector.shape_cast %38 : vector<1x64x64xf32> to vector<64x64xf32>
    %cst_41 = arith.constant dense<0.000000e+00> : vector<40x64xf32>
    %40 = tpu.matmul %37, %39, %cst_41 {dimension_numbers = #tpu.dot_dimension_numbers<[1], [0], [0], [1], [0, 0, 1, 1], [], []>} : vector<40x64xf32>, vector<64x64xf32>, vector<40x64xf32> -> vector<40x64xf32>
    %41 = arith.addf %36, %40 : vector<40x64xf32>
    %c23 = arith.constant 23 : index
    %c0_42 = arith.constant 0 : index
    %42 = vector.load %arg8[%c23, %c0_42] : memref<72x64xf32, #tpu.memory_space<vmem>>, vector<40x64xf32>
    %c6 = arith.constant 6 : index
    %c0_43 = arith.constant 0 : index
    %c0_44 = arith.constant 0 : index
    %43 = vector.load %arg4[%c6, %c0_43, %c0_44] : memref<9x64x64xf32, #tpu.memory_space<vmem>>, vector<1x64x64xf32>
    %44 = vector.shape_cast %43 : vector<1x64x64xf32> to vector<64x64xf32>
    %cst_45 = arith.constant dense<0.000000e+00> : vector<40x64xf32>
    %45 = tpu.matmul %42, %44, %cst_45 {dimension_numbers = #tpu.dot_dimension_numbers<[1], [0], [0], [1], [0, 0, 1, 1], [], []>} : vector<40x64xf32>, vector<64x64xf32>, vector<40x64xf32> -> vector<40x64xf32>
    %46 = arith.addf %41, %45 : vector<40x64xf32>
    %c24 = arith.constant 24 : index
    %c0_46 = arith.constant 0 : index
    %47 = vector.load %arg8[%c24, %c0_46] : memref<72x64xf32, #tpu.memory_space<vmem>>, vector<40x64xf32>
    %c7_47 = arith.constant 7 : index
    %c0_48 = arith.constant 0 : index
    %c0_49 = arith.constant 0 : index
    %48 = vector.load %arg4[%c7_47, %c0_48, %c0_49] : memref<9x64x64xf32, #tpu.memory_space<vmem>>, vector<1x64x64xf32>
    %49 = vector.shape_cast %48 : vector<1x64x64xf32> to vector<64x64xf32>
    %cst_50 = arith.constant dense<0.000000e+00> : vector<40x64xf32>
    %50 = tpu.matmul %47, %49, %cst_50 {dimension_numbers = #tpu.dot_dimension_numbers<[1], [0], [0], [1], [0, 0, 1, 1], [], []>} : vector<40x64xf32>, vector<64x64xf32>, vector<40x64xf32> -> vector<40x64xf32>
    %51 = arith.addf %46, %50 : vector<40x64xf32>
    %c25 = arith.constant 25 : index
    %c0_51 = arith.constant 0 : index
    %52 = vector.load %arg8[%c25, %c0_51] : memref<72x64xf32, #tpu.memory_space<vmem>>, vector<40x64xf32>
    %c8_52 = arith.constant 8 : index
    %c0_53 = arith.constant 0 : index
    %c0_54 = arith.constant 0 : index
    %53 = vector.load %arg4[%c8_52, %c0_53, %c0_54] : memref<9x64x64xf32, #tpu.memory_space<vmem>>, vector<1x64x64xf32>
    %54 = vector.shape_cast %53 : vector<1x64x64xf32> to vector<64x64xf32>
    %cst_55 = arith.constant dense<0.000000e+00> : vector<40x64xf32>
    %55 = tpu.matmul %52, %54, %cst_55 {dimension_numbers = #tpu.dot_dimension_numbers<[1], [0], [0], [1], [0, 0, 1, 1], [], []>} : vector<40x64xf32>, vector<64x64xf32>, vector<40x64xf32> -> vector<40x64xf32>
    %56 = arith.addf %51, %55 : vector<40x64xf32>
    %57 = vector.broadcast %8 : vector<1x64xf32> to vector<40x64xf32>
    %58 = arith.addf %56, %57 : vector<40x64xf32>
    %cst_56 = arith.constant 0.000000e+00 : f32
    %59 = vector.broadcast %cst_56 : f32 to vector<40x64xf32>
    %60 = arith.maximumf %58, %59 : vector<40x64xf32>
    %61 = vector.extract_strided_slice %60 {offsets = [0, 0], sizes = [40, 16], strides = [1, 1]} : vector<40x64xf32> to vector<40x16xf32>
    %62 = vector.extract_strided_slice %60 {offsets = [0, 16], sizes = [40, 16], strides = [1, 1]} : vector<40x64xf32> to vector<40x16xf32>
    %63 = arith.maximumf %61, %62 : vector<40x16xf32>
    %64 = vector.extract_strided_slice %60 {offsets = [0, 32], sizes = [40, 16], strides = [1, 1]} : vector<40x64xf32> to vector<40x16xf32>
    %65 = vector.extract_strided_slice %60 {offsets = [0, 48], sizes = [40, 16], strides = [1, 1]} : vector<40x64xf32> to vector<40x16xf32>
    %66 = arith.maximumf %64, %65 : vector<40x16xf32>
    %67 = arith.maximumf %63, %66 : vector<40x16xf32>
    %c0_57 = arith.constant 0 : index
    %c0_58 = arith.constant 0 : index
    %c0_59 = arith.constant 0 : index
    %68 = vector.load %arg3[%c0_57, %c0_58, %c0_59] : memref<1x40x1xf32, #tpu.memory_space<vmem>>, vector<1x40x1xf32>
    %69 = vector.shape_cast %68 : vector<1x40x1xf32> to vector<40x1xf32>
    %70 = vector.broadcast %69 : vector<40x1xf32> to vector<40x16xf32>
    %71 = arith.mulf %67, %70 : vector<40x16xf32>
    %c16_60 = arith.constant 16 : index
    %c0_61 = arith.constant 0 : index
    %72 = vector.load %arg9[%c16_60, %c0_61] : memref<72x16xf32, #tpu.memory_space<vmem>>, vector<40x16xf32>
    tpu.vector_store %arg9[%c16_60, %c0_61], %71 {strides = array<i32>} : memref<72x16xf32, #tpu.memory_space<vmem>>, vector<40x16xf32>,
    %c7_62 = arith.constant 7 : index
    %c0_63 = arith.constant 0 : index
    %73 = vector.load %arg9[%c7_62, %c0_63] : memref<72x16xf32, #tpu.memory_space<vmem>>, vector<40x16xf32>
    %c0_64 = arith.constant 0 : index
    %c0_65 = arith.constant 0 : index
    %c0_66 = arith.constant 0 : index
    %74 = vector.load %arg5[%c0_64, %c0_65, %c0_66] : memref<9x16x16xf32, #tpu.memory_space<vmem>>, vector<1x16x16xf32>
    %75 = vector.shape_cast %74 : vector<1x16x16xf32> to vector<16x16xf32>
    %cst_67 = arith.constant dense<0.000000e+00> : vector<40x16xf32>
    %76 = tpu.matmul %73, %75, %cst_67 {dimension_numbers = #tpu.dot_dimension_numbers<[1], [0], [0], [1], [0, 0, 1, 1], [], []>} : vector<40x16xf32>, vector<16x16xf32>, vector<40x16xf32> -> vector<40x16xf32>
    %c8_68 = arith.constant 8 : index
    %c0_69 = arith.constant 0 : index
    %77 = vector.load %arg9[%c8_68, %c0_69] : memref<72x16xf32, #tpu.memory_space<vmem>>, vector<40x16xf32>
    %c1_70 = arith.constant 1 : index
    %c0_71 = arith.constant 0 : index
    %c0_72 = arith.constant 0 : index
    %78 = vector.load %arg5[%c1_70, %c0_71, %c0_72] : memref<9x16x16xf32, #tpu.memory_space<vmem>>, vector<1x16x16xf32>
    %79 = vector.shape_cast %78 : vector<1x16x16xf32> to vector<16x16xf32>
    %cst_73 = arith.constant dense<0.000000e+00> : vector<40x16xf32>
    %80 = tpu.matmul %77, %79, %cst_73 {dimension_numbers = #tpu.dot_dimension_numbers<[1], [0], [0], [1], [0, 0, 1, 1], [], []>} : vector<40x16xf32>, vector<16x16xf32>, vector<40x16xf32> -> vector<40x16xf32>
    %81 = arith.addf %76, %80 : vector<40x16xf32>
    %c9_74 = arith.constant 9 : index
    %c0_75 = arith.constant 0 : index
    %82 = vector.load %arg9[%c9_74, %c0_75] : memref<72x16xf32, #tpu.memory_space<vmem>>, vector<40x16xf32>
    %c2_76 = arith.constant 2 : index
    %c0_77 = arith.constant 0 : index
    %c0_78 = arith.constant 0 : index
    %83 = vector.load %arg5[%c2_76, %c0_77, %c0_78] : memref<9x16x16xf32, #tpu.memory_space<vmem>>, vector<1x16x16xf32>
    %84 = vector.shape_cast %83 : vector<1x16x16xf32> to vector<16x16xf32>
    %cst_79 = arith.constant dense<0.000000e+00> : vector<40x16xf32>
    %85 = tpu.matmul %82, %84, %cst_79 {dimension_numbers = #tpu.dot_dimension_numbers<[1], [0], [0], [1], [0, 0, 1, 1], [], []>} : vector<40x16xf32>, vector<16x16xf32>, vector<40x16xf32> -> vector<40x16xf32>
    %86 = arith.addf %81, %85 : vector<40x16xf32>
    %c15_80 = arith.constant 15 : index
    %c0_81 = arith.constant 0 : index
    %87 = vector.load %arg9[%c15_80, %c0_81] : memref<72x16xf32, #tpu.memory_space<vmem>>, vector<40x16xf32>
    %c3_82 = arith.constant 3 : index
    %c0_83 = arith.constant 0 : index
    %c0_84 = arith.constant 0 : index
    %88 = vector.load %arg5[%c3_82, %c0_83, %c0_84] : memref<9x16x16xf32, #tpu.memory_space<vmem>>, vector<1x16x16xf32>
    %89 = vector.shape_cast %88 : vector<1x16x16xf32> to vector<16x16xf32>
    %cst_85 = arith.constant dense<0.000000e+00> : vector<40x16xf32>
    %90 = tpu.matmul %87, %89, %cst_85 {dimension_numbers = #tpu.dot_dimension_numbers<[1], [0], [0], [1], [0, 0, 1, 1], [], []>} : vector<40x16xf32>, vector<16x16xf32>, vector<40x16xf32> -> vector<40x16xf32>
    %91 = arith.addf %86, %90 : vector<40x16xf32>
    %c16_86 = arith.constant 16 : index
    %c0_87 = arith.constant 0 : index
    %92 = vector.load %arg9[%c16_86, %c0_87] : memref<72x16xf32, #tpu.memory_space<vmem>>, vector<40x16xf32>
    %c4_88 = arith.constant 4 : index
    %c0_89 = arith.constant 0 : index
    %c0_90 = arith.constant 0 : index
    %93 = vector.load %arg5[%c4_88, %c0_89, %c0_90] : memref<9x16x16xf32, #tpu.memory_space<vmem>>, vector<1x16x16xf32>
    %94 = vector.shape_cast %93 : vector<1x16x16xf32> to vector<16x16xf32>
    %cst_91 = arith.constant dense<0.000000e+00> : vector<40x16xf32>
    %95 = tpu.matmul %92, %94, %cst_91 {dimension_numbers = #tpu.dot_dimension_numbers<[1], [0], [0], [1], [0, 0, 1, 1], [], []>} : vector<40x16xf32>, vector<16x16xf32>, vector<40x16xf32> -> vector<40x16xf32>
    %96 = arith.addf %91, %95 : vector<40x16xf32>
    %c17_92 = arith.constant 17 : index
    %c0_93 = arith.constant 0 : index
    %97 = vector.load %arg9[%c17_92, %c0_93] : memref<72x16xf32, #tpu.memory_space<vmem>>, vector<40x16xf32>
    %c5_94 = arith.constant 5 : index
    %c0_95 = arith.constant 0 : index
    %c0_96 = arith.constant 0 : index
    %98 = vector.load %arg5[%c5_94, %c0_95, %c0_96] : memref<9x16x16xf32, #tpu.memory_space<vmem>>, vector<1x16x16xf32>
    %99 = vector.shape_cast %98 : vector<1x16x16xf32> to vector<16x16xf32>
    %cst_97 = arith.constant dense<0.000000e+00> : vector<40x16xf32>
    %100 = tpu.matmul %97, %99, %cst_97 {dimension_numbers = #tpu.dot_dimension_numbers<[1], [0], [0], [1], [0, 0, 1, 1], [], []>} : vector<40x16xf32>, vector<16x16xf32>, vector<40x16xf32> -> vector<40x16xf32>
    %101 = arith.addf %96, %100 : vector<40x16xf32>
    %c23_98 = arith.constant 23 : index
    %c0_99 = arith.constant 0 : index
    %102 = vector.load %arg9[%c23_98, %c0_99] : memref<72x16xf32, #tpu.memory_space<vmem>>, vector<40x16xf32>
    %c6_100 = arith.constant 6 : index
    %c0_101 = arith.constant 0 : index
    %c0_102 = arith.constant 0 : index
    %103 = vector.load %arg5[%c6_100, %c0_101, %c0_102] : memref<9x16x16xf32, #tpu.memory_space<vmem>>, vector<1x16x16xf32>
    %104 = vector.shape_cast %103 : vector<1x16x16xf32> to vector<16x16xf32>
    %cst_103 = arith.constant dense<0.000000e+00> : vector<40x16xf32>
    %105 = tpu.matmul %102, %104, %cst_103 {dimension_numbers = #tpu.dot_dimension_numbers<[1], [0], [0], [1], [0, 0, 1, 1], [], []>} : vector<40x16xf32>, vector<16x16xf32>, vector<40x16xf32> -> vector<40x16xf32>
    %106 = arith.addf %101, %105 : vector<40x16xf32>
    %c24_104 = arith.constant 24 : index
    %c0_105 = arith.constant 0 : index
    %107 = vector.load %arg9[%c24_104, %c0_105] : memref<72x16xf32, #tpu.memory_space<vmem>>, vector<40x16xf32>
    %c7_106 = arith.constant 7 : index
    %c0_107 = arith.constant 0 : index
    %c0_108 = arith.constant 0 : index
    %108 = vector.load %arg5[%c7_106, %c0_107, %c0_108] : memref<9x16x16xf32, #tpu.memory_space<vmem>>, vector<1x16x16xf32>
    %109 = vector.shape_cast %108 : vector<1x16x16xf32> to vector<16x16xf32>
    %cst_109 = arith.constant dense<0.000000e+00> : vector<40x16xf32>
    %110 = tpu.matmul %107, %109, %cst_109 {dimension_numbers = #tpu.dot_dimension_numbers<[1], [0], [0], [1], [0, 0, 1, 1], [], []>} : vector<40x16xf32>, vector<16x16xf32>, vector<40x16xf32> -> vector<40x16xf32>
    %111 = arith.addf %106, %110 : vector<40x16xf32>
    %c25_110 = arith.constant 25 : index
    %c0_111 = arith.constant 0 : index
    %112 = vector.load %arg9[%c25_110, %c0_111] : memref<72x16xf32, #tpu.memory_space<vmem>>, vector<40x16xf32>
    %c8_112 = arith.constant 8 : index
    %c0_113 = arith.constant 0 : index
    %c0_114 = arith.constant 0 : index
    %113 = vector.load %arg5[%c8_112, %c0_113, %c0_114] : memref<9x16x16xf32, #tpu.memory_space<vmem>>, vector<1x16x16xf32>
    %114 = vector.shape_cast %113 : vector<1x16x16xf32> to vector<16x16xf32>
    %cst_115 = arith.constant dense<0.000000e+00> : vector<40x16xf32>
    %115 = tpu.matmul %112, %114, %cst_115 {dimension_numbers = #tpu.dot_dimension_numbers<[1], [0], [0], [1], [0, 0, 1, 1], [], []>} : vector<40x16xf32>, vector<16x16xf32>, vector<40x16xf32> -> vector<40x16xf32>
    %116 = arith.addf %111, %115 : vector<40x16xf32>
    %117 = vector.broadcast %9 : vector<1x16xf32> to vector<40x16xf32>
    %118 = arith.addf %116, %117 : vector<40x16xf32>
    %cst_116 = arith.constant 0.000000e+00 : f32
    %119 = vector.broadcast %cst_116 : f32 to vector<40x16xf32>
    %120 = arith.maximumf %118, %119 : vector<40x16xf32>
    %121 = vector.extract_strided_slice %120 {offsets = [0, 0], sizes = [40, 4], strides = [1, 1]} : vector<40x16xf32> to vector<40x4xf32>
    %122 = vector.extract_strided_slice %120 {offsets = [0, 4], sizes = [40, 4], strides = [1, 1]} : vector<40x16xf32> to vector<40x4xf32>
    %123 = arith.maximumf %121, %122 : vector<40x4xf32>
    %124 = vector.extract_strided_slice %120 {offsets = [0, 8], sizes = [40, 4], strides = [1, 1]} : vector<40x16xf32> to vector<40x4xf32>
    %125 = vector.extract_strided_slice %120 {offsets = [0, 12], sizes = [40, 4], strides = [1, 1]} : vector<40x16xf32> to vector<40x4xf32>
    %126 = arith.maximumf %124, %125 : vector<40x4xf32>
    %127 = arith.maximumf %123, %126 : vector<40x4xf32>
    %c0_117 = arith.constant 0 : index
    %c0_118 = arith.constant 0 : index
    %c0_119 = arith.constant 0 : index
    %128 = vector.load %arg2[%c0_117, %c0_118, %c0_119] : memref<1x40x1xf32, #tpu.memory_space<vmem>>, vector<1x40x1xf32>
    %129 = vector.shape_cast %128 : vector<1x40x1xf32> to vector<40x1xf32>
    %130 = vector.broadcast %129 : vector<40x1xf32> to vector<40x4xf32>
    %131 = arith.mulf %127, %130 : vector<40x4xf32>
    %cst_120 = arith.constant dense<0.000000e+00> : vector<4xf32>
    %132 = vector.multi_reduction <add>, %131, %cst_120 [0] : vector<40x4xf32> to vector<4xf32>
    %133 = vector.shape_cast %132 : vector<4xf32> to vector<1x4xf32>
    %cst_121 = arith.constant 0.000000e+00 : f32
    %134 = vector.broadcast %cst_121 : f32 to vector<1x124xf32>
    %135 = tpu.concatenate %133, %134 in 1 : vector<1x4xf32>, vector<1x124xf32> -> vector<1x128xf32>
    %c0_122 = arith.constant 0 : index
    %c0_123 = arith.constant 0 : index
    %c0_124 = arith.constant 0 : index
    %136 = vector.load %arg7[%c0_122, %c0_123, %c0_124] : memref<1x1x128xf32, #tpu.memory_space<vmem>>, vector<1x1x128xf32>
    %137 = vector.shape_cast %136 : vector<1x1x128xf32> to vector<1x128xf32>
    %138 = vector.shape_cast %135 : vector<1x128xf32> to vector<1x1x128xf32>
    tpu.vector_store %arg7[%c0_122, %c0_123, %c0_124], %138 {strides = array<i32>} : memref<1x1x128xf32, #tpu.memory_space<vmem>>, vector<1x1x128xf32>,
    return
  }
  func.func @transform_0(%arg0: i32) -> (i32, i32, i32) {
    %c0_i32 = arith.constant 0 : i32
    %c0_i32_0 = arith.constant 0 : i32
    %c0_i32_1 = arith.constant 0 : i32
    return %arg0, %c0_i32, %c0_i32_0 : i32, i32, i32
  }
  func.func @transform_1(%arg0: i32) -> (i32, i32, i32) {
    %c0_i32 = arith.constant 0 : i32
    %c0_i32_0 = arith.constant 0 : i32
    %c0_i32_1 = arith.constant 0 : i32
    return %arg0, %c0_i32, %c0_i32_0 : i32, i32, i32
  }
  func.func @transform_2(%arg0: i32) -> (i32, i32, i32) {
    %c0_i32 = arith.constant 0 : i32
    %c0_i32_0 = arith.constant 0 : i32
    %c0_i32_1 = arith.constant 0 : i32
    %c0_i32_2 = arith.constant 0 : i32
    return %c0_i32, %c0_i32_0, %c0_i32_1 : i32, i32, i32
  }
  func.func @transform_3(%arg0: i32) -> (i32, i32, i32) {
    %c0_i32 = arith.constant 0 : i32
    %c0_i32_0 = arith.constant 0 : i32
    %c0_i32_1 = arith.constant 0 : i32
    %c0_i32_2 = arith.constant 0 : i32
    return %c0_i32, %c0_i32_0, %c0_i32_1 : i32, i32, i32
  }
  func.func @transform_4(%arg0: i32) -> (i32, i32, i32) {
    %c0_i32 = arith.constant 0 : i32
    %c0_i32_0 = arith.constant 0 : i32
    %c0_i32_1 = arith.constant 0 : i32
    %c0_i32_2 = arith.constant 0 : i32
    return %c0_i32, %c0_i32_0, %c0_i32_1 : i32, i32, i32
  }
  func.func @transform_5(%arg0: i32) -> (i32, i32) {
    %c0_i32 = arith.constant 0 : i32
    %c0_i32_0 = arith.constant 0 : i32
    %c0_i32_1 = arith.constant 0 : i32
    return %c0_i32, %c0_i32_0 : i32, i32
  }
  func.func @transform_6(%arg0: i32) -> (i32, i32, i32) {
    %c0_i32 = arith.constant 0 : i32
    %c0_i32_0 = arith.constant 0 : i32
    %c0_i32_1 = arith.constant 0 : i32
    return %arg0, %c0_i32, %c0_i32_0 : i32, i32, i32
  }
}

</mosaic_0001>

<llo_original>
// kernel: tile.18
$region0: #{tile.18}
  #allocation2 [shape = 's32[1]{0}', space=sflag, size = 0x4, scoped, tag = 'scoped memory for tile.18']
  %s0 = inlined_call_operand.hbm [shape: f32[4], index: 0, kind: input, shape index: {}]
  %s1 = inlined_call_operand.vmem [shape: f32[4,4], index: 1, kind: output, shape index: {}]
  $region1: #{tile.18} parent=0
    #allocation0 [shape = 'u8[512]{0}', space=vmem, size = 0x400, scoped, tag = 'operand span for operand 0']
    #allocation1 [shape = 's32[1]{0}', space=sflag, size = 0x4, scoped, tag = 'scoped memory for tile.18']
    %2 = vsyncpa [#allocation1], 0
    // Predicated region
    $region2: #{tile.18} parent=1 // pred_check
      _
    $region3: #{tile.18} parent=1 // pred_check_branch
      %4 = sbr.rel (0) target = $region5
    $region4: #{tile.18} parent=1 // pred_region
      %s6 = ssub.s32 16, 16
      %7 = vsyncadd [#allocation1], %s6
      %s9 = sshll.u32 [#allocation0], 4
      %s10 = int_to_ptr.vmem [resolvable:$true] %s9
      %12 = dma.hbm_to_vmem [thread:$0]  %s0, 16, %s10, [#allocation1]
    $region5: #{tile.18} parent=1 // pred_fallthru
      _
    // Predicated region
    $region6: #{tile.18} parent=1 // pred_check
      _
    $region7: #{tile.18} parent=1 // pred_check_branch
      %14 = sbr.rel (0) target = $region9
    $region8: #{tile.18} parent=1 // pred_region
      %15 = dma.done [#allocation1], 16
    $region9: #{tile.18} parent=1 // pred_fallthru
      _
    %v16 = vld [vmem:[#allocation0] ss:$0 sm:$0xff]
    %17 = vst [vmem:[%s1] sm:$0xf] %v16
    %18 = vsyncpa [#allocation1], 1

// kernel: attention_model_pallas.1
$region0: #{attention_model_pallas.1}
  #allocation0 [shape = 'u32[]', space=smem, size = 0x4, offset = 0x4, fixed_abs, tag = 'smem constant byte address 0x4 - core index']
  #allocation1 [shape = 'u32[144,128]{1,0:T(1,128)}', space=vmem, size = 0x12000, scoped, tag = 'internal scratch']
  #allocation2 [shape = 'f32[72,64]{1,0:T(8,128)}', space=vmem, size = 0x9000, scoped, tag = 'scratch operand']
  #allocation3 [shape = 'f32[72,16]{1,0:T(8,128)}', space=vmem, size = 0x9000, scoped, tag = 'scratch operand']
  %s0 = inlined_call_operand.vmem [shape: f32[2,40,64], index: 0, kind: input, shape index: {}]
  %s1 = inlined_call_operand.vmem [shape: f32[2,40,1], index: 1, kind: input, shape index: {}]
  %s2 = inlined_call_operand.vmem [shape: f32[1,40,1], index: 2, kind: input, shape index: {}]
  %s3 = inlined_call_operand.vmem [shape: f32[9,64,64], index: 3, kind: input, shape index: {}]
  %s4 = inlined_call_operand.vmem [shape: f32[9,16,16], index: 4, kind: input, shape index: {}]
  %s5 = inlined_call_operand.vmem [shape: f32[1,128], index: 5, kind: input, shape index: {}]
  %s6 = inlined_call_operand.vmem [shape: f32[2,1,128], index: 6, kind: output, shape index: {}]
  %s7 = sld [smem:[#allocation0]]
  $region57: #{attention_model_pallas.1} parent=0
    _
  %s9 = ssub.s32 1, %s7
  %s10 = scalar_select 0, %s9, %s7
  loop: start=0, step=1, limit=4
  $region2: #{attention_model_pallas.1} parent=0 // loop_pre_header
    _
  $region3: #{attention_model_pallas.1} parent=0 // loop_header
    %s12 = sphi 0, %s16
    %p13 = scmp.ge.s32.totalorder %s12, 4
    %s22 = sphi 0, %s24
    %s25 = sphi 0, %s22
    %s26 = sphi 0, %s25
    %s42 = sphi 0, %s26
    %s48 = sphi 0, %s50
    %s51 = sphi 0, %s48
    %s52 = sphi 0, %s51
    %s68 = sphi 0, %s52
    %s72 = sphi 0, %s72
    %s74 = sphi 0, %s72
    %s75 = sphi 0, %s74
    %s89 = sphi 0, %s75
    %s93 = sphi 0, %s93
    %s95 = sphi 0, %s93
    %s96 = sphi 0, %s95
    %s110 = sphi 0, %s96
    %s114 = sphi 0, %s114
    %s116 = sphi 0, %s114
    %s117 = sphi 0, %s116
    %s131 = sphi 0, %s117
    %s135 = sphi 0, %s135
    %s137 = sphi 0, %s135
    %s138 = sphi 0, %s137
    %s152 = sphi 0, %s138
    %s158 = sphi 0, %s160
    %s161 = sphi 0, %s158
    %s162 = sphi 0, %s161
    %s178 = sphi 0, %s162
  $region4: #{attention_model_pallas.1} parent=0 // loop_header_branch
    %15 = sbr.rel (%p13) target = $region8
  $region5: #{attention_model_pallas.1} parent=0 // loop_body
    %s17 = ssub.s32 %s12, 1
    %s18 = ssub.s32 %s12, 2
    %s19 = sadd.s32 %s12, 1
    %s20 = ssub.s32 %s12, %s19
    %p21 = scmp.eq.s32.totalorder %s20, 0
    %s23 = sadd.s32 %s22, 1
    %s24 = scalar_select %p21, %s22, %s23
    %p27 = pneg %p21
    %p28 = scmp.eq.s32.totalorder %s12, 1
    %p29 = por %p27, %p28
    %p30 = scmp.ne.s32.totalorder %s22, %s25
    %p31 = scmp.eq.s32.totalorder %s12, 0
    %p32 = por %p30, %p31
    %p33 = scmp.ne.s32.totalorder %s22, %s25
    %p34 = scmp.eq.s32.totalorder %s17, 1
    %p35 = por %p33, %p34
    %p36 = scmp.ne.s32.totalorder %s25, %s26
    %p37 = scmp.eq.s32.totalorder %s17, 0
    %p38 = por %p36, %p37
    %p39 = scmp.ne.s32.totalorder %s25, %s26
    %p40 = scmp.eq.s32.totalorder %s18, 1
    %p41 = por %p39, %p40
    %p43 = scmp.ne.s32.totalorder %s26, %s42
    %p44 = scmp.eq.s32.totalorder %s18, 0
    %p45 = por %p43, %p44
    %s46 = ssub.s32 %s12, %s19
    %p47 = scmp.eq.s32.totalorder %s46, 0
    %s49 = sadd.s32 %s48, 1
    %s50 = scalar_select %p47, %s48, %s49
    %p53 = pneg %p47
    %p54 = scmp.eq.s32.totalorder %s12, 1
    %p55 = por %p53, %p54
    %p56 = scmp.ne.s32.totalorder %s48, %s51
    %p57 = scmp.eq.s32.totalorder %s12, 0
    %p58 = por %p56, %p57
    %p59 = scmp.ne.s32.totalorder %s48, %s51
    %p60 = scmp.eq.s32.totalorder %s17, 1
    %p61 = por %p59, %p60
    %p62 = scmp.ne.s32.totalorder %s51, %s52
    %p63 = scmp.eq.s32.totalorder %s17, 0
    %p64 = por %p62, %p63
    %p65 = scmp.ne.s32.totalorder %s51, %s52
    %p66 = scmp.eq.s32.totalorder %s18, 1
    %p67 = por %p65, %p66
    %p69 = scmp.ne.s32.totalorder %s52, %s68
    %p70 = scmp.eq.s32.totalorder %s18, 0
    %p71 = por %p69, %p70
    %s73 = sadd.s32 %s72, 1
    %p76 = scmp.eq.s32.totalorder %s12, 1
    %p77 = scmp.ne.s32.totalorder %s72, %s74
    %p78 = scmp.eq.s32.totalorder %s12, 0
    %p79 = por %p77, %p78
    %p80 = scmp.ne.s32.totalorder %s72, %s74
    %p81 = scmp.eq.s32.totalorder %s17, 1
    %p82 = por %p80, %p81
    %p83 = scmp.ne.s32.totalorder %s74, %s75
    %p84 = scmp.eq.s32.totalorder %s17, 0
    %p85 = por %p83, %p84
    %p86 = scmp.ne.s32.totalorder %s74, %s75
    %p87 = scmp.eq.s32.totalorder %s18, 1
    %p88 = por %p86, %p87
    %p90 = scmp.ne.s32.totalorder %s75, %s89
    %p91 = scmp.eq.s32.totalorder %s18, 0
    %p92 = por %p90, %p91
    %s94 = sadd.s32 %s93, 1
    %p97 = scmp.eq.s32.totalorder %s12, 1
    %p98 = scmp.ne.s32.totalorder %s93, %s95
    %p99 = scmp.eq.s32.totalorder %s12, 0
    %p100 = por %p98, %p99
    %p101 = scmp.ne.s32.totalorder %s93, %s95
    %p102 = scmp.eq.s32.totalorder %s17, 1
    %p103 = por %p101, %p102
    %p104 = scmp.ne.s32.totalorder %s95, %s96
    %p105 = scmp.eq.s32.totalorder %s17, 0
    %p106 = por %p104, %p105
    %p107 = scmp.ne.s32.totalorder %s95, %s96
    %p108 = scmp.eq.s32.totalorder %s18, 1
    %p109 = por %p107, %p108
    %p111 = scmp.ne.s32.totalorder %s96, %s110
    %p112 = scmp.eq.s32.totalorder %s18, 0
    %p113 = por %p111, %p112
    %s115 = sadd.s32 %s114, 1
    %p118 = scmp.eq.s32.totalorder %s12, 1
    %p119 = scmp.ne.s32.totalorder %s114, %s116
    %p120 = scmp.eq.s32.totalorder %s12, 0
    %p121 = por %p119, %p120
    %p122 = scmp.ne.s32.totalorder %s114, %s116
    %p123 = scmp.eq.s32.totalorder %s17, 1
    %p124 = por %p122, %p123
    %p125 = scmp.ne.s32.totalorder %s116, %s117
    %p126 = scmp.eq.s32.totalorder %s17, 0
    %p127 = por %p125, %p126
    %p128 = scmp.ne.s32.totalorder %s116, %s117
    %p129 = scmp.eq.s32.totalorder %s18, 1
    %p130 = por %p128, %p129
    %p132 = scmp.ne.s32.totalorder %s117, %s131
    %p133 = scmp.eq.s32.totalorder %s18, 0
    %p134 = por %p132, %p133
    %s136 = sadd.s32 %s135, 1
    %p139 = scmp.eq.s32.totalorder %s12, 1
    %p140 = scmp.ne.s32.totalorder %s135, %s137
    %p141 = scmp.eq.s32.totalorder %s12, 0
    %p142 = por %p140, %p141
    %p143 = scmp.ne.s32.totalorder %s135, %s137
    %p144 = scmp.eq.s32.totalorder %s17, 1
    %p145 = por %p143, %p144
    %p146 = scmp.ne.s32.totalorder %s137, %s138
    %p147 = scmp.eq.s32.totalorder %s17, 0
    %p148 = por %p146, %p147
    %p149 = scmp.ne.s32.totalorder %s137, %s138
    %p150 = scmp.eq.s32.totalorder %s18, 1
    %p151 = por %p149, %p150
    %p153 = scmp.ne.s32.totalorder %s138, %s152
    %p154 = scmp.eq.s32.totalorder %s18, 0
    %p155 = por %p153, %p154
    %s156 = ssub.s32 %s12, %s19
    %p157 = scmp.eq.s32.totalorder %s156, 0
    %s159 = sadd.s32 %s158, 1
    %s160 = scalar_select %p157, %s158, %s159
    %p163 = pneg %p157
    %p164 = scmp.eq.s32.totalorder %s12, 1
    %p165 = por %p163, %p164
    %p166 = scmp.ne.s32.totalorder %s158, %s161
    %p167 = scmp.eq.s32.totalorder %s12, 0
    %p168 = por %p166, %p167
    %p169 = scmp.ne.s32.totalorder %s158, %s161
    %p170 = scmp.eq.s32.totalorder %s17, 1
    %p171 = por %p169, %p170
    %p172 = scmp.ne.s32.totalorder %s161, %s162
    %p173 = scmp.eq.s32.totalorder %s17, 0
    %p174 = por %p172, %p173
    %p175 = scmp.ne.s32.totalorder %s161, %s162
    %p176 = scmp.eq.s32.totalorder %s18, 1
    %p177 = por %p175, %p176
    %p179 = scmp.ne.s32.totalorder %s162, %s178
    %p180 = scmp.eq.s32.totalorder %s18, 0
    %p181 = por %p179, %p180
    %p182 = scmp.le.s32.totalorder 1, %s12
    %p183 = scmp.lt.s32.totalorder %s12, 3
    %p184 = pnand %p182, %p183
    %p185 = pneg %p184
    // Predicated region
    $region9: #{attention_model_pallas.1} parent=5 // pred_check
      _
    $region10: #{attention_model_pallas.1} parent=5 // pred_check_branch
      %187 = sbr.rel (%p184) target = $region12
    $region11: #{attention_model_pallas.1} parent=5 // pred_region
      %s188 = ssub.s32 %s12, 1
      // Predicated region
      $region13: #{attention_model_pallas.1} parent=11 // pred_check
        %p189 = pneg %p85
      $region14: #{attention_model_pallas.1} parent=11 // pred_check_branch
        %191 = sbr.rel (%p189) target = $region16
      $region15: #{attention_model_pallas.1} parent=11 // pred_region
        _
      $region16: #{attention_model_pallas.1} parent=11 // pred_fallthru
        _
      // Predicated region
      $region17: #{attention_model_pallas.1} parent=11 // pred_check
        %p192 = pneg %p106
      $region18: #{attention_model_pallas.1} parent=11 // pred_check_branch
        %194 = sbr.rel (%p192) target = $region20
      $region19: #{attention_model_pallas.1} parent=11 // pred_region
        _
      $region20: #{attention_model_pallas.1} parent=11 // pred_fallthru
        _
      // Predicated region
      $region21: #{attention_model_pallas.1} parent=11 // pred_check
        %p195 = pneg %p127
      $region22: #{attention_model_pallas.1} parent=11 // pred_check_branch
        %197 = sbr.rel (%p195) target = $region24
      $region23: #{attention_model_pallas.1} parent=11 // pred_region
        _
      $region24: #{attention_model_pallas.1} parent=11 // pred_fallthru
        _
      // Predicated region
      $region25: #{attention_model_pallas.1} parent=11 // pred_check
        %p198 = pneg %p148
      $region26: #{attention_model_pallas.1} parent=11 // pred_check_branch
        %200 = sbr.rel (%p198) target = $region28
      $region27: #{attention_model_pallas.1} parent=11 // pred_region
        _
      $region28: #{attention_model_pallas.1} parent=11 // pred_fallthru
        _
    $region12: #{attention_model_pallas.1} parent=5 // pred_fallthru
      _
    %p201 = scmp.lt.s32.totalorder %s12, 2
    // Predicated region
    $region29: #{attention_model_pallas.1} parent=5 // pred_check
      %p202 = pneg %p201
    $region30: #{attention_model_pallas.1} parent=5 // pred_check_branch
      %204 = sbr.rel (%p202) target = $region32
    $region31: #{attention_model_pallas.1} parent=5 // pred_region
      // Predicated region
      $region33: #{attention_model_pallas.1} parent=31 // pred_check
        %p205 = pneg %p32
      $region34: #{attention_model_pallas.1} parent=31 // pred_check_branch
        %207 = sbr.rel (%p205) target = $region36
      $region35: #{attention_model_pallas.1} parent=31 // pred_region
        %p208 = scmp.lt.s32.totalorder %s12, 1
        %s209 = scalar_select %p208, %s12, 1
        %s210 = smul.addr %s209, 5
        %s211 = smul.addr %s210, 8
        %s212 = scalar_lea.vmem %s0, %s211
      $region36: #{attention_model_pallas.1} parent=31 // pred_fallthru
        _
      // Predicated region
      $region37: #{attention_model_pallas.1} parent=31 // pred_check
        %p213 = pneg %p58
      $region38: #{attention_model_pallas.1} parent=31 // pred_check_branch
        %215 = sbr.rel (%p213) target = $region40
      $region39: #{attention_model_pallas.1} parent=31 // pred_region
        %p216 = scmp.lt.s32.totalorder %s12, 1
        %s217 = scalar_select %p216, %s12, 1
        %s218 = smul.addr %s217, 5
        %s219 = smul.addr %s218, 8
        %s220 = scalar_lea.vmem %s1, %s219
      $region40: #{attention_model_pallas.1} parent=31 // pred_fallthru
        _
    $region32: #{attention_model_pallas.1} parent=5 // pred_fallthru
      _
    %p221 = scmp.le.s32.totalorder 1, %s12
    %p222 = scmp.lt.s32.totalorder %s12, 3
    %p223 = pnand %p221, %p222
    %p224 = pneg %p223
    // Predicated region
    $region41: #{attention_model_pallas.1} parent=5 // pred_check
      _
    $region42: #{attention_model_pallas.1} parent=5 // pred_check_branch
      %226 = sbr.rel (%p223) target = $region44
    $region43: #{attention_model_pallas.1} parent=5 // pred_region
      %s227 = ssub.s32 %s12, 1
      %p228 = scmp.lt.s32.totalorder %s17, 1
      %s229 = scalar_select %p228, %s17, 1
      %s230 = smul.addr %s229, 5
      %s231 = smul.addr %s230, 8
      %s232 = scalar_lea.vmem %s0, %s231
      %p233 = pneg %p38
      %p234 = pneg %p35
      %p235 = scmp.lt.s32.totalorder %s17, 1
      %s236 = scalar_select %p235, %s17, 1
      %s237 = smul.addr %s236, 5
      %s238 = smul.addr %s237, 8
      %s239 = scalar_lea.vmem %s1, %s238
      %p240 = pneg %p64
      %p241 = pneg %p61
      %p242 = pneg %p85
      %p243 = pneg %p82
      %p244 = pneg %p106
      %p245 = pneg %p103
      %p246 = pneg %p127
      %p247 = pneg %p124
      %p248 = pneg %p148
      %p249 = pneg %p145
      %p250 = pneg %p174
      %p251 = pneg %p171
      %p252 = scmp.lt.s32.totalorder %s17, 1
      %s253 = scalar_select %p252, %s17, 1
      %s254 = scalar_lea.vmem %s6, %s253
      %p255 = scmp.lt.s32.totalorder %s17, 1
      %s256 = scalar_select %p255, %s17, 1
      %s257 = smul.addr %s256, 5
      %s258 = smul.addr %s257, 8
      %s259 = scalar_lea.vmem %s0, %s258
      %p260 = scmp.lt.s32.totalorder %s17, 1
      %s261 = scalar_select %p260, %s17, 1
      %s262 = smul.addr %s261, 5
      %s263 = smul.addr %s262, 8
      %s264 = scalar_lea.vmem %s1, %s263
      %p265 = scmp.lt.s32.totalorder %s17, 1
      %s266 = scalar_select %p265, %s17, 1
      %s267 = scalar_lea.vmem %s6, %s266
      %vm268 = vcmask 523264
      %269 = vst.msk [vmem:[#allocation2] sm:$0xff] %vm268, 0.0
      %270 = vst.msk [vmem:[#allocation2 + $0x8] sm:$0xff] %vm268, 0.0
      %271 = vst.msk [vmem:[#allocation2 + $0x38] sm:$0xff] %vm268, 0.0
      %272 = vst.msk [vmem:[#allocation2 + $0x40] sm:$0xff] %vm268, 0.0
      %vm273 = vcmask 130048
      %274 = vst.msk [vmem:[#allocation3] sm:$0xff] %vm273, 0.0
      %275 = vst.msk [vmem:[#allocation3 + $0x8] sm:$0xff] %vm273, 0.0
      %276 = vst.msk [vmem:[#allocation3 + $0x38] sm:$0xff] %vm273, 0.0
      %277 = vst.msk [vmem:[#allocation3 + $0x40] sm:$0xff] %vm273, 0.0
      %v278 = vld [vmem:[%s5] sm:$0x1]
      %v279 = vld [vmem:[%s259] sm:$0xff]
      %v280 = vld [vmem:[%s259 + $0x8] sm:$0xff]
      %v281 = vld [vmem:[%s259 + $0x10] sm:$0xff]
      %v282 = vld [vmem:[%s259 + $0x18] sm:$0xff]
      %v283 = vld [vmem:[%s259 + $0x20] sm:$0xff]
      %284 = vst.msk [vmem:[#allocation2 + $0x10] sm:$0xff] %vm268, %v279
      %285 = vst.msk [vmem:[#allocation2 + $0x18] sm:$0xff] %vm268, %v280
      %286 = vst.msk [vmem:[#allocation2 + $0x20] sm:$0xff] %vm268, %v281
      %287 = vst.msk [vmem:[#allocation2 + $0x28] sm:$0xff] %vm268, %v282
      %288 = vst.msk [vmem:[#allocation2 + $0x30] sm:$0xff] %vm268, %v283
      %v289 = vld [vmem:[#allocation2 + $0x7] sm:$0xff]
      %v290 = vld [vmem:[#allocation2 + $0xf] sm:$0xff]
      %v291 = vld [vmem:[#allocation2 + $0x17] sm:$0xff]
      %v292 = vld [vmem:[#allocation2 + $0x1f] sm:$0xff]
      %v293 = vld [vmem:[#allocation2 + $0x27] sm:$0xff]
      %v294 = vld [vmem:[%s3] sm:$0xff]
      %v295 = vld [vmem:[%s3 + $0x8] sm:$0xff]
      %v296 = vld [vmem:[%s3 + $0x10] sm:$0xff]
      %v297 = vld [vmem:[%s3 + $0x18] sm:$0xff]
      %v298 = vld [vmem:[%s3 + $0x20] sm:$0xff]
      %v299 = vld [vmem:[%s3 + $0x28] sm:$0xff]
      %v300 = vld [vmem:[%s3 + $0x30] sm:$0xff]
      %v301 = vld [vmem:[%s3 + $0x38] sm:$0xff]
      %v302 = vld [vmem:[#allocation2 + $0x8] sm:$0xff]
      %v303 = vld [vmem:[#allocation2 + $0x10] sm:$0xff]
      %v304 = vld [vmem:[#allocation2 + $0x18] sm:$0xff]
      %v305 = vld [vmem:[#allocation2 + $0x20] sm:$0xff]
      %v306 = vld [vmem:[#allocation2 + $0x28] sm:$0xff]
      %s307 = scalar_lea.vmem %s3, 64
      %v308 = vld [vmem:[%s307] sm:$0xff]
      %v309 = vld [vmem:[%s307 + $0x8] sm:$0xff]
      %v310 = vld [vmem:[%s307 + $0x10] sm:$0xff]
      %v311 = vld [vmem:[%s307 + $0x18] sm:$0xff]
      %v312 = vld [vmem:[%s307 + $0x20] sm:$0xff]
      %v313 = vld [vmem:[%s307 + $0x28] sm:$0xff]
      %v314 = vld [vmem:[%s307 + $0x30] sm:$0xff]
      %v315 = vld [vmem:[%s307 + $0x38] sm:$0xff]
      %v317 = vsel %vm268, %v302, 0
      %v320 = vsel %vm268, %v303, 0
      %v323 = vsel %vm268, %v304, 0
      %v326 = vsel %vm268, %v305, 0
      %v329 = vsel %vm268, %v306, 0
      %331 = vmatprep.subr.mxu0 0.0
      %332 = vmatpush1.msra.mxu0 0.0
      %333 = vmatprep.subr.mxu0 0.0
      %334 = vmatpush1.msra.mxu0 0.0
      %335 = vmatprep.subr.mxu0 0.0
      %336 = vmatpush1.msra.mxu0 0.0
      %337 = vmatprep.subr.mxu0 0.0
      %338 = vmatpush1.msra.mxu0 0.0
      %339 = vmatprep.subr.mxu0 0.0
      %340 = vmatpush1.msra.mxu0 0.0
      %341 = vmatprep.subr.mxu0 0.0
      %342 = vmatpush1.msra.mxu0 0.0
      %343 = vmatprep.subr.mxu0 0.0
      %344 = vmatpush1.msra.mxu0 0.0
      %345 = vmatprep.subr.mxu0 0.0
      %346 = vmatpush1.msra.mxu0 0.0
      %347 = vmatprep.subr.mxu0 0.0
      %348 = vmatpush1.msra.mxu0 %v315
      %349 = vmatprep.subr.mxu0 0.0
      %350 = vmatpush1.msra.mxu0 %v314
      %351 = vmatprep.subr.mxu0 0.0
      %352 = vmatpush1.msra.mxu0 %v313
      %353 = vmatprep.subr.mxu0 0.0
      %354 = vmatpush1.msra.mxu0 %v312
      %355 = vmatprep.subr.mxu0 0.0
      %356 = vmatpush1.msra.mxu0 %v311
      %357 = vmatprep.subr.mxu0 0.0
      %358 = vmatpush1.msra.mxu0 %v310
      %359 = vmatprep.subr.mxu0 0.0
      %360 = vmatpush1.msra.mxu0 %v309
      %361 = vmatprep.subr.mxu0 0.0
      %362 = vmatpush1.msra.mxu0 %v308
      %363 = vmatprep.subr.mxu0 0.0
      %364 = vmatpush2.msra.mxu0 0.0
      %365 = vmatprep.subr.mxu0 0.0
      %366 = vmatpush2.msra.mxu0 0.0
      %367 = vmatprep.subr.mxu0 0.0
      %368 = vmatpush2.msra.mxu0 0.0
      %369 = vmatprep.subr.mxu0 0.0
      %370 = vmatpush2.msra.mxu0 0.0
      %371 = vmatprep.subr.mxu0 0.0
      %372 = vmatpush2.msra.mxu0 0.0
      %373 = vmatprep.subr.mxu0 0.0
      %374 = vmatpush2.msra.mxu0 0.0
      %375 = vmatprep.subr.mxu0 0.0
      %376 = vmatpush2.msra.mxu0 0.0
      %377 = vmatprep.subr.mxu0 0.0
      %378 = vmatpush2.msra.mxu0 0.0
      %379 = vmatprep.subr.mxu0 0.0
      %380 = vmatpush2.msra.mxu0 0.0
      %381 = vmatprep.subr.mxu0 0.0
      %382 = vmatpush2.msra.mxu0 0.0
      %383 = vmatprep.subr.mxu0 0.0
      %384 = vmatpush2.msra.mxu0 0.0
      %385 = vmatprep.subr.mxu0 0.0
      %386 = vmatpush2.msra.mxu0 0.0
      %387 = vmatprep.subr.mxu0 0.0
      %388 = vmatpush2.msra.mxu0 0.0
      %389 = vmatprep.subr.mxu0 0.0
      %390 = vmatpush2.msra.mxu0 0.0
      %391 = vmatprep.subr.mxu0 0.0
      %392 = vmatpush2.msra.mxu0 0.0
      %393 = vmatprep.subr.mxu0 0.0
      %394 = vmatpush2.msra.mxu0 0.0
      %395 = vmatprep.mubr.f32.mxu0 0.0
      %396 = vmatmul.mubr.f32.gmra.mxu0 %v317
      %v397 = vpop.f32.mrf.mxu0
      %v398 = vadd.f32 0.0, %v397
      %v399 = vpop.f32.mrf.mxu0
      %400 = vmatprep.mubr.f32.mxu0 0.0
      %401 = vmatmul.mubr.f32.gmra.mxu0 %v320
      %v402 = vpop.f32.mrf.mxu0
      %v403 = vadd.f32 0.0, %v402
      %v404 = vpop.f32.mrf.mxu0
      %405 = vmatprep.mubr.f32.mxu0 0.0
      %406 = vmatmul.mubr.f32.gmra.mxu0 %v323
      %v407 = vpop.f32.mrf.mxu0
      %v408 = vadd.f32 0.0, %v407
      %v409 = vpop.f32.mrf.mxu0
      %410 = vmatprep.mubr.f32.mxu0 0.0
      %411 = vmatmul.mubr.f32.gmra.mxu0 %v326
      %v412 = vpop.f32.mrf.mxu0
      %v413 = vadd.f32 0.0, %v412
      %v414 = vpop.f32.mrf.mxu0
      %415 = vmatprep.mubr.f32.mxu0 0.0
      %416 = vmatmul.mubr.f32.gmra.mxu0 %v329
      %v417 = vpop.f32.mrf.mxu0
      %v418 = vadd.f32 0.0, %v417
      %v419 = vpop.f32.mrf.mxu0
      %420 = vdwg.mxu0
      %v422 = vsel %vm268, %v289, 0
      %v425 = vsel %vm268, %v290, 0
      %v428 = vsel %vm268, %v291, 0
      %v431 = vsel %vm268, %v292, 0
      %v434 = vsel %vm268, %v293, 0
      %436 = vmatprep.subr.mxu0 0.0
      %437 = vmatpush1.msra.mxu0 0.0
      %438 = vmatprep.subr.mxu0 0.0
      %439 = vmatpush1.msra.mxu0 0.0
      %440 = vmatprep.subr.mxu0 0.0
      %441 = vmatpush1.msra.mxu0 0.0
      %442 = vmatprep.subr.mxu0 0.0
      %443 = vmatpush1.msra.mxu0 0.0
      %444 = vmatprep.subr.mxu0 0.0
      %445 = vmatpush1.msra.mxu0 0.0
      %446 = vmatprep.subr.mxu0 0.0
      %447 = vmatpush1.msra.mxu0 0.0
      %448 = vmatprep.subr.mxu0 0.0
      %449 = vmatpush1.msra.mxu0 0.0
      %450 = vmatprep.subr.mxu0 0.0
      %451 = vmatpush1.msra.mxu0 0.0
      %452 = vmatprep.subr.mxu0 0.0
      %453 = vmatpush1.msra.mxu0 %v301
      %454 = vmatprep.subr.mxu0 0.0
      %455 = vmatpush1.msra.mxu0 %v300
      %456 = vmatprep.subr.mxu0 0.0
      %457 = vmatpush1.msra.mxu0 %v299
      %458 = vmatprep.subr.mxu0 0.0
      %459 = vmatpush1.msra.mxu0 %v298
      %460 = vmatprep.subr.mxu0 0.0
      %461 = vmatpush1.msra.mxu0 %v297
      %462 = vmatprep.subr.mxu0 0.0
      %463 = vmatpush1.msra.mxu0 %v296
      %464 = vmatprep.subr.mxu0 0.0
      %465 = vmatpush1.msra.mxu0 %v295
      %466 = vmatprep.subr.mxu0 0.0
      %467 = vmatpush1.msra.mxu0 %v294
      %468 = vmatprep.subr.mxu0 0.0
      %469 = vmatpush2.msra.mxu0 0.0
      %470 = vmatprep.subr.mxu0 0.0
      %471 = vmatpush2.msra.mxu0 0.0
      %472 = vmatprep.subr.mxu0 0.0
      %473 = vmatpush2.msra.mxu0 0.0
      %474 = vmatprep.subr.mxu0 0.0
      %475 = vmatpush2.msra.mxu0 0.0
      %476 = vmatprep.subr.mxu0 0.0
      %477 = vmatpush2.msra.mxu0 0.0
      %478 = vmatprep.subr.mxu0 0.0
      %479 = vmatpush2.msra.mxu0 0.0
      %480 = vmatprep.subr.mxu0 0.0
      %481 = vmatpush2.msra.mxu0 0.0
      %482 = vmatprep.subr.mxu0 0.0
      %483 = vmatpush2.msra.mxu0 0.0
      %484 = vmatprep.subr.mxu0 0.0
      %485 = vmatpush2.msra.mxu0 0.0
      %486 = vmatprep.subr.mxu0 0.0
      %487 = vmatpush2.msra.mxu0 0.0
      %488 = vmatprep.subr.mxu0 0.0
      %489 = vmatpush2.msra.mxu0 0.0
      %490 = vmatprep.subr.mxu0 0.0
      %491 = vmatpush2.msra.mxu0 0.0
      %492 = vmatprep.subr.mxu0 0.0
      %493 = vmatpush2.msra.mxu0 0.0
      %494 = vmatprep.subr.mxu0 0.0
      %495 = vmatpush2.msra.mxu0 0.0
      %496 = vmatprep.subr.mxu0 0.0
      %497 = vmatpush2.msra.mxu0 0.0
      %498 = vmatprep.subr.mxu0 0.0
      %499 = vmatpush2.msra.mxu0 0.0
      %500 = vmatprep.mubr.f32.mxu0 0.0
      %501 = vmatmul.mubr.f32.gmra.mxu0 %v422
      %v502 = vpop.f32.mrf.mxu0
      %v503 = vadd.f32 %v398, %v502
      %v504 = vpop.f32.mrf.mxu0
      %505 = vmatprep.mubr.f32.mxu0 0.0
      %506 = vmatmul.mubr.f32.gmra.mxu0 %v425
      %v507 = vpop.f32.mrf.mxu0
      %v508 = vadd.f32 %v403, %v507
      %v509 = vpop.f32.mrf.mxu0
      %510 = vmatprep.mubr.f32.mxu0 0.0
      %511 = vmatmul.mubr.f32.gmra.mxu0 %v428
      %v512 = vpop.f32.mrf.mxu0
      %v513 = vadd.f32 %v408, %v512
      %v514 = vpop.f32.mrf.mxu0
      %515 = vmatprep.mubr.f32.mxu0 0.0
      %516 = vmatmul.mubr.f32.gmra.mxu0 %v431
      %v517 = vpop.f32.mrf.mxu0
      %v518 = vadd.f32 %v413, %v517
      %v519 = vpop.f32.mrf.mxu0
      %520 = vmatprep.mubr.f32.mxu0 0.0
      %521 = vmatmul.mubr.f32.gmra.mxu0 %v434
      %v522 = vpop.f32.mrf.mxu0
      %v523 = vadd.f32 %v418, %v522
      %v524 = vpop.f32.mrf.mxu0
      %525 = vdwg.mxu0
      %v526 = vld [vmem:[#allocation2 + $0x9] sm:$0xff]
      %v527 = vld [vmem:[#allocation2 + $0x11] sm:$0xff]
      %v528 = vld [vmem:[#allocation2 + $0x19] sm:$0xff]
      %v529 = vld [vmem:[#allocation2 + $0x21] sm:$0xff]
      %v530 = vld [vmem:[#allocation2 + $0x29] sm:$0xff]
      %s531 = scalar_lea.vmem %s3, 128
      %v532 = vld [vmem:[%s531] sm:$0xff]
      %v533 = vld [vmem:[%s531 + $0x8] sm:$0xff]
      %v534 = vld [vmem:[%s531 + $0x10] sm:$0xff]
      %v535 = vld [vmem:[%s531 + $0x18] sm:$0xff]
      %v536 = vld [vmem:[%s531 + $0x20] sm:$0xff]
      %v537 = vld [vmem:[%s531 + $0x28] sm:$0xff]
      %v538 = vld [vmem:[%s531 + $0x30] sm:$0xff]
      %v539 = vld [vmem:[%s531 + $0x38] sm:$0xff]
      %v541 = vsel %vm268, %v526, 0
      %v544 = vsel %vm268, %v527, 0
      %v547 = vsel %vm268, %v528, 0
      %v550 = vsel %vm268, %v529, 0
      %v553 = vsel %vm268, %v530, 0
      %555 = vmatprep.subr.mxu0 0.0
      %556 = vmatpush1.msra.mxu0 0.0
      %557 = vmatprep.subr.mxu0 0.0
      %558 = vmatpush1.msra.mxu0 0.0
      %559 = vmatprep.subr.mxu0 0.0
      %560 = vmatpush1.msra.mxu0 0.0
      %561 = vmatprep.subr.mxu0 0.0
      %562 = vmatpush1.msra.mxu0 0.0
      %563 = vmatprep.subr.mxu0 0.0
      %564 = vmatpush1.msra.mxu0 0.0
      %565 = vmatprep.subr.mxu0 0.0
      %566 = vmatpush1.msra.mxu0 0.0
      %567 = vmatprep.subr.mxu0 0.0
      %568 = vmatpush1.msra.mxu0 0.0
      %569 = vmatprep.subr.mxu0 0.0
      %570 = vmatpush1.msra.mxu0 0.0
      %571 = vmatprep.subr.mxu0 0.0
      %572 = vmatpush1.msra.mxu0 %v539
      %573 = vmatprep.subr.mxu0 0.0
      %574 = vmatpush1.msra.mxu0 %v538
      %575 = vmatprep.subr.mxu0 0.0
      %576 = vmatpush1.msra.mxu0 %v537
      %577 = vmatprep.subr.mxu0 0.0
      %578 = vmatpush1.msra.mxu0 %v536
      %579 = vmatprep.subr.mxu0 0.0
      %580 = vmatpush1.msra.mxu0 %v535
      %581 = vmatprep.subr.mxu0 0.0
      %582 = vmatpush1.msra.mxu0 %v534
      %583 = vmatprep.subr.mxu0 0.0
      %584 = vmatpush1.msra.mxu0 %v533
      %585 = vmatprep.subr.mxu0 0.0
      %586 = vmatpush1.msra.mxu0 %v532
      %587 = vmatprep.subr.mxu0 0.0
      %588 = vmatpush2.msra.mxu0 0.0
      %589 = vmatprep.subr.mxu0 0.0
      %590 = vmatpush2.msra.mxu0 0.0
      %591 = vmatprep.subr.mxu0 0.0
      %592 = vmatpush2.msra.mxu0 0.0
      %593 = vmatprep.subr.mxu0 0.0
      %594 = vmatpush2.msra.mxu0 0.0
      %595 = vmatprep.subr.mxu0 0.0
      %596 = vmatpush2.msra.mxu0 0.0
      %597 = vmatprep.subr.mxu0 0.0
      %598 = vmatpush2.msra.mxu0 0.0
      %599 = vmatprep.subr.mxu0 0.0
      %600 = vmatpush2.msra.mxu0 0.0
      %601 = vmatprep.subr.mxu0 0.0
      %602 = vmatpush2.msra.mxu0 0.0
      %603 = vmatprep.subr.mxu0 0.0
      %604 = vmatpush2.msra.mxu0 0.0
      %605 = vmatprep.subr.mxu0 0.0
      %606 = vmatpush2.msra.mxu0 0.0
      %607 = vmatprep.subr.mxu0 0.0
      %608 = vmatpush2.msra.mxu0 0.0
      %609 = vmatprep.subr.mxu0 0.0
      %610 = vmatpush2.msra.mxu0 0.0
      %611 = vmatprep.subr.mxu0 0.0
      %612 = vmatpush2.msra.mxu0 0.0
      %613 = vmatprep.subr.mxu0 0.0
      %614 = vmatpush2.msra.mxu0 0.0
      %615 = vmatprep.subr.mxu0 0.0
      %616 = vmatpush2.msra.mxu0 0.0
      %617 = vmatprep.subr.mxu0 0.0
      %618 = vmatpush2.msra.mxu0 0.0
      %619 = vmatprep.mubr.f32.mxu0 0.0
      %620 = vmatmul.mubr.f32.gmra.mxu0 %v541
      %v621 = vpop.f32.mrf.mxu0
      %v622 = vadd.f32 0.0, %v621
      %v623 = vpop.f32.mrf.mxu0
      %624 = vmatprep.mubr.f32.mxu0 0.0
      %625 = vmatmul.mubr.f32.gmra.mxu0 %v544
      %v626 = vpop.f32.mrf.mxu0
      %v627 = vadd.f32 0.0, %v626
      %v628 = vpop.f32.mrf.mxu0
      %629 = vmatprep.mubr.f32.mxu0 0.0
      %630 = vmatmul.mubr.f32.gmra.mxu0 %v547
      %v631 = vpop.f32.mrf.mxu0
      %v632 = vadd.f32 0.0, %v631
      %v633 = vpop.f32.mrf.mxu0
      %634 = vmatprep.mubr.f32.mxu0 0.0
      %635 = vmatmul.mubr.f32.gmra.mxu0 %v550
      %v636 = vpop.f32.mrf.mxu0
      %v637 = vadd.f32 0.0, %v636
      %v638 = vpop.f32.mrf.mxu0
      %639 = vmatprep.mubr.f32.mxu0 0.0
      %640 = vmatmul.mubr.f32.gmra.mxu0 %v553
      %v641 = vpop.f32.mrf.mxu0
      %v642 = vadd.f32 0.0, %v641
      %v643 = vpop.f32.mrf.mxu0
      %644 = vdwg.mxu0
      %v645 = vadd.f32 %v503, %v622
      %v646 = vadd.f32 %v508, %v627
      %v647 = vadd.f32 %v513, %v632
      %v648 = vadd.f32 %v518, %v637
      %v649 = vadd.f32 %v523, %v642
      %v650 = vld [vmem:[#allocation2 + $0xf] sm:$0xff]
      %v651 = vld [vmem:[#allocation2 + $0x17] sm:$0xff]
      %v652 = vld [vmem:[#allocation2 + $0x1f] sm:$0xff]
      %v653 = vld [vmem:[#allocation2 + $0x27] sm:$0xff]
      %v654 = vld [vmem:[#allocation2 + $0x2f] sm:$0xff]
      %s655 = scalar_lea.vmem %s3, 192
      %v656 = vld [vmem:[%s655] sm:$0xff]
      %v657 = vld [vmem:[%s655 + $0x8] sm:$0xff]
      %v658 = vld [vmem:[%s655 + $0x10] sm:$0xff]
      %v659 = vld [vmem:[%s655 + $0x18] sm:$0xff]
      %v660 = vld [vmem:[%s655 + $0x20] sm:$0xff]
      %v661 = vld [vmem:[%s655 + $0x28] sm:$0xff]
      %v662 = vld [vmem:[%s655 + $0x30] sm:$0xff]
      %v663 = vld [vmem:[%s655 + $0x38] sm:$0xff]
      %v665 = vsel %vm268, %v650, 0
      %v668 = vsel %vm268, %v651, 0
      %v671 = vsel %vm268, %v652, 0
      %v674 = vsel %vm268, %v653, 0
      %v677 = vsel %vm268, %v654, 0
      %679 = vmatprep.subr.mxu0 0.0
      %680 = vmatpush1.msra.mxu0 0.0
      %681 = vmatprep.subr.mxu0 0.0
      %682 = vmatpush1.msra.mxu0 0.0
      %683 = vmatprep.subr.mxu0 0.0
      %684 = vmatpush1.msra.mxu0 0.0
      %685 = vmatprep.subr.mxu0 0.0
      %686 = vmatpush1.msra.mxu0 0.0
      %687 = vmatprep.subr.mxu0 0.0
      %688 = vmatpush1.msra.mxu0 0.0
      %689 = vmatprep.subr.mxu0 0.0
      %690 = vmatpush1.msra.mxu0 0.0
      %691 = vmatprep.subr.mxu0 0.0
      %692 = vmatpush1.msra.mxu0 0.0
      %693 = vmatprep.subr.mxu0 0.0
      %694 = vmatpush1.msra.mxu0 0.0
      %695 = vmatprep.subr.mxu0 0.0
      %696 = vmatpush1.msra.mxu0 %v663
      %697 = vmatprep.subr.mxu0 0.0
      %698 = vmatpush1.msra.mxu0 %v662
      %699 = vmatprep.subr.mxu0 0.0
      %700 = vmatpush1.msra.mxu0 %v661
      %701 = vmatprep.subr.mxu0 0.0
      %702 = vmatpush1.msra.mxu0 %v660
      %703 = vmatprep.subr.mxu0 0.0
      %704 = vmatpush1.msra.mxu0 %v659
      %705 = vmatprep.subr.mxu0 0.0
      %706 = vmatpush1.msra.mxu0 %v658
      %707 = vmatprep.subr.mxu0 0.0
      %708 = vmatpush1.msra.mxu0 %v657
      %709 = vmatprep.subr.mxu0 0.0
      %710 = vmatpush1.msra.mxu0 %v656
      %711 = vmatprep.subr.mxu0 0.0
      %712 = vmatpush2.msra.mxu0 0.0
      %713 = vmatprep.subr.mxu0 0.0
      %714 = vmatpush2.msra.mxu0 0.0
      %715 = vmatprep.subr.mxu0 0.0
      %716 = vmatpush2.msra.mxu0 0.0
      %717 = vmatprep.subr.mxu0 0.0
      %718 = vmatpush2.msra.mxu0 0.0
      %719 = vmatprep.subr.mxu0 0.0
      %720 = vmatpush2.msra.mxu0 0.0
      %721 = vmatprep.subr.mxu0 0.0
      %722 = vmatpush2.msra.mxu0 0.0
      %723 = vmatprep.subr.mxu0 0.0
      %724 = vmatpush2.msra.mxu0 0.0
      %725 = vmatprep.subr.mxu0 0.0
      %726 = vmatpush2.msra.mxu0 0.0
      %727 = vmatprep.subr.mxu0 0.0
      %728 = vmatpush2.msra.mxu0 0.0
      %729 = vmatprep.subr.mxu0 0.0
      %730 = vmatpush2.msra.mxu0 0.0
      %731 = vmatprep.subr.mxu0 0.0
      %732 = vmatpush2.msra.mxu0 0.0
      %733 = vmatprep.subr.mxu0 0.0
      %734 = vmatpush2.msra.mxu0 0.0
      %735 = vmatprep.subr.mxu0 0.0
      %736 = vmatpush2.msra.mxu0 0.0
      %737 = vmatprep.subr.mxu0 0.0
      %738 = vmatpush2.msra.mxu0 0.0
      %739 = vmatprep.subr.mxu0 0.0
      %740 = vmatpush2.msra.mxu0 0.0
      %741 = vmatprep.subr.mxu0 0.0
      %742 = vmatpush2.msra.mxu0 0.0
      %743 = vmatprep.mubr.f32.mxu0 0.0
      %744 = vmatmul.mubr.f32.gmra.mxu0 %v665
      %v745 = vpop.f32.mrf.mxu0
      %v746 = vadd.f32 0.0, %v745
      %v747 = vpop.f32.mrf.mxu0
      %748 = vmatprep.mubr.f32.mxu0 0.0
      %749 = vmatmul.mubr.f32.gmra.mxu0 %v668
      %v750 = vpop.f32.mrf.mxu0
      %v751 = vadd.f32 0.0, %v750
      %v752 = vpop.f32.mrf.mxu0
      %753 = vmatprep.mubr.f32.mxu0 0.0
      %754 = vmatmul.mubr.f32.gmra.mxu0 %v671
      %v755 = vpop.f32.mrf.mxu0
      %v756 = vadd.f32 0.0, %v755
      %v757 = vpop.f32.mrf.mxu0
      %758 = vmatprep.mubr.f32.mxu0 0.0
      %759 = vmatmul.mubr.f32.gmra.mxu0 %v674
      %v760 = vpop.f32.mrf.mxu0
      %v761 = vadd.f32 0.0, %v760
      %v762 = vpop.f32.mrf.mxu0
      %763 = vmatprep.mubr.f32.mxu0 0.0
      %764 = vmatmul.mubr.f32.gmra.mxu0 %v677
      %v765 = vpop.f32.mrf.mxu0
      %v766 = vadd.f32 0.0, %v765
      %v767 = vpop.f32.mrf.mxu0
      %768 = vdwg.mxu0
      %v769 = vadd.f32 %v645, %v746
      %v770 = vadd.f32 %v646, %v751
      %v771 = vadd.f32 %v647, %v756
      %v772 = vadd.f32 %v648, %v761
      %v773 = vadd.f32 %v649, %v766
      %v774 = vld [vmem:[#allocation2 + $0x10] sm:$0xff]
      %v775 = vld [vmem:[#allocation2 + $0x18] sm:$0xff]
      %v776 = vld [vmem:[#allocation2 + $0x20] sm:$0xff]
      %v777 = vld [vmem:[#allocation2 + $0x28] sm:$0xff]
      %v778 = vld [vmem:[#allocation2 + $0x30] sm:$0xff]
      %s779 = scalar_lea.vmem %s3, 256
      %v780 = vld [vmem:[%s779] sm:$0xff]
      %v781 = vld [vmem:[%s779 + $0x8] sm:$0xff]
      %v782 = vld [vmem:[%s779 + $0x10] sm:$0xff]
      %v783 = vld [vmem:[%s779 + $0x18] sm:$0xff]
      %v784 = vld [vmem:[%s779 + $0x20] sm:$0xff]
      %v785 = vld [vmem:[%s779 + $0x28] sm:$0xff]
      %v786 = vld [vmem:[%s779 + $0x30] sm:$0xff]
      %v787 = vld [vmem:[%s779 + $0x38] sm:$0xff]
      %v789 = vsel %vm268, %v774, 0
      %v792 = vsel %vm268, %v775, 0
      %v795 = vsel %vm268, %v776, 0
      %v798 = vsel %vm268, %v777, 0
      %v801 = vsel %vm268, %v778, 0
      %803 = vmatprep.subr.mxu0 0.0
      %804 = vmatpush1.msra.mxu0 0.0
      %805 = vmatprep.subr.mxu0 0.0
      %806 = vmatpush1.msra.mxu0 0.0
      %807 = vmatprep.subr.mxu0 0.0
      %808 = vmatpush1.msra.mxu0 0.0
      %809 = vmatprep.subr.mxu0 0.0
      %810 = vmatpush1.msra.mxu0 0.0
      %811 = vmatprep.subr.mxu0 0.0
      %812 = vmatpush1.msra.mxu0 0.0
      %813 = vmatprep.subr.mxu0 0.0
      %814 = vmatpush1.msra.mxu0 0.0
      %815 = vmatprep.subr.mxu0 0.0
      %816 = vmatpush1.msra.mxu0 0.0
      %817 = vmatprep.subr.mxu0 0.0
      %818 = vmatpush1.msra.mxu0 0.0
      %819 = vmatprep.subr.mxu0 0.0
      %820 = vmatpush1.msra.mxu0 %v787
      %821 = vmatprep.subr.mxu0 0.0
      %822 = vmatpush1.msra.mxu0 %v786
      %823 = vmatprep.subr.mxu0 0.0
      %824 = vmatpush1.msra.mxu0 %v785
      %825 = vmatprep.subr.mxu0 0.0
      %826 = vmatpush1.msra.mxu0 %v784
      %827 = vmatprep.subr.mxu0 0.0
      %828 = vmatpush1.msra.mxu0 %v783
      %829 = vmatprep.subr.mxu0 0.0
      %830 = vmatpush1.msra.mxu0 %v782
      %831 = vmatprep.subr.mxu0 0.0
      %832 = vmatpush1.msra.mxu0 %v781
      %833 = vmatprep.subr.mxu0 0.0
      %834 = vmatpush1.msra.mxu0 %v780
      %835 = vmatprep.subr.mxu0 0.0
      %836 = vmatpush2.msra.mxu0 0.0
      %837 = vmatprep.subr.mxu0 0.0
      %838 = vmatpush2.msra.mxu0 0.0
      %839 = vmatprep.subr.mxu0 0.0
      %840 = vmatpush2.msra.mxu0 0.0
      %841 = vmatprep.subr.mxu0 0.0
      %842 = vmatpush2.msra.mxu0 0.0
      %843 = vmatprep.subr.mxu0 0.0
      %844 = vmatpush2.msra.mxu0 0.0
      %845 = vmatprep.subr.mxu0 0.0
      %846 = vmatpush2.msra.mxu0 0.0
      %847 = vmatprep.subr.mxu0 0.0
      %848 = vmatpush2.msra.mxu0 0.0
      %849 = vmatprep.subr.mxu0 0.0
      %850 = vmatpush2.msra.mxu0 0.0
      %851 = vmatprep.subr.mxu0 0.0
      %852 = vmatpush2.msra.mxu0 0.0
      %853 = vmatprep.subr.mxu0 0.0
      %854 = vmatpush2.msra.mxu0 0.0
      %855 = vmatprep.subr.mxu0 0.0
      %856 = vmatpush2.msra.mxu0 0.0
      %857 = vmatprep.subr.mxu0 0.0
      %858 = vmatpush2.msra.mxu0 0.0
      %859 = vmatprep.subr.mxu0 0.0
      %860 = vmatpush2.msra.mxu0 0.0
      %861 = vmatprep.subr.mxu0 0.0
      %862 = vmatpush2.msra.mxu0 0.0
      %863 = vmatprep.subr.mxu0 0.0
      %864 = vmatpush2.msra.mxu0 0.0
      %865 = vmatprep.subr.mxu0 0.0
      %866 = vmatpush2.msra.mxu0 0.0
      %867 = vmatprep.mubr.f32.mxu0 0.0
      %868 = vmatmul.mubr.f32.gmra.mxu0 %v789
      %v869 = vpop.f32.mrf.mxu0
      %v870 = vadd.f32 0.0, %v869
      %v871 = vpop.f32.mrf.mxu0
      %872 = vmatprep.mubr.f32.mxu0 0.0
      %873 = vmatmul.mubr.f32.gmra.mxu0 %v792
      %v874 = vpop.f32.mrf.mxu0
      %v875 = vadd.f32 0.0, %v874
      %v876 = vpop.f32.mrf.mxu0
      %877 = vmatprep.mubr.f32.mxu0 0.0
      %878 = vmatmul.mubr.f32.gmra.mxu0 %v795
      %v879 = vpop.f32.mrf.mxu0
      %v880 = vadd.f32 0.0, %v879
      %v881 = vpop.f32.mrf.mxu0
      %882 = vmatprep.mubr.f32.mxu0 0.0
      %883 = vmatmul.mubr.f32.gmra.mxu0 %v798
      %v884 = vpop.f32.mrf.mxu0
      %v885 = vadd.f32 0.0, %v884
      %v886 = vpop.f32.mrf.mxu0
      %887 = vmatprep.mubr.f32.mxu0 0.0
      %888 = vmatmul.mubr.f32.gmra.mxu0 %v801
      %v889 = vpop.f32.mrf.mxu0
      %v890 = vadd.f32 0.0, %v889
      %v891 = vpop.f32.mrf.mxu0
      %892 = vdwg.mxu0
      %v893 = vadd.f32 %v769, %v870
      %v894 = vadd.f32 %v770, %v875
      %v895 = vadd.f32 %v771, %v880
      %v896 = vadd.f32 %v772, %v885
      %v897 = vadd.f32 %v773, %v890
      %v898 = vld [vmem:[#allocation2 + $0x11] sm:$0xff]
      %v899 = vld [vmem:[#allocation2 + $0x19] sm:$0xff]
      %v900 = vld [vmem:[#allocation2 + $0x21] sm:$0xff]
      %v901 = vld [vmem:[#allocation2 + $0x29] sm:$0xff]
      %v902 = vld [vmem:[#allocation2 + $0x31] sm:$0xff]
      %s903 = scalar_lea.vmem %s3, 320
      %v904 = vld [vmem:[%s903] sm:$0xff]
      %v905 = vld [vmem:[%s903 + $0x8] sm:$0xff]
      %v906 = vld [vmem:[%s903 + $0x10] sm:$0xff]
      %v907 = vld [vmem:[%s903 + $0x18] sm:$0xff]
      %v908 = vld [vmem:[%s903 + $0x20] sm:$0xff]
      %v909 = vld [vmem:[%s903 + $0x28] sm:$0xff]
      %v910 = vld [vmem:[%s903 + $0x30] sm:$0xff]
      %v911 = vld [vmem:[%s903 + $0x38] sm:$0xff]
      %v913 = vsel %vm268, %v898, 0
      %v916 = vsel %vm268, %v899, 0
      %v919 = vsel %vm268, %v900, 0
      %v922 = vsel %vm268, %v901, 0
      %v925 = vsel %vm268, %v902, 0
      %927 = vmatprep.subr.mxu0 0.0
      %928 = vmatpush1.msra.mxu0 0.0
      %929 = vmatprep.subr.mxu0 0.0
      %930 = vmatpush1.msra.mxu0 0.0
      %931 = vmatprep.subr.mxu0 0.0
      %932 = vmatpush1.msra.mxu0 0.0
      %933 = vmatprep.subr.mxu0 0.0
      %934 = vmatpush1.msra.mxu0 0.0
      %935 = vmatprep.subr.mxu0 0.0
      %936 = vmatpush1.msra.mxu0 0.0
      %937 = vmatprep.subr.mxu0 0.0
      %938 = vmatpush1.msra.mxu0 0.0
      %939 = vmatprep.subr.mxu0 0.0
      %940 = vmatpush1.msra.mxu0 0.0
      %941 = vmatprep.subr.mxu0 0.0
      %942 = vmatpush1.msra.mxu0 0.0
      %943 = vmatprep.subr.mxu0 0.0
      %944 = vmatpush1.msra.mxu0 %v911
      %945 = vmatprep.subr.mxu0 0.0
      %946 = vmatpush1.msra.mxu0 %v910
      %947 = vmatprep.subr.mxu0 0.0
      %948 = vmatpush1.msra.mxu0 %v909
      %949 = vmatprep.subr.mxu0 0.0
      %950 = vmatpush1.msra.mxu0 %v908
      %951 = vmatprep.subr.mxu0 0.0
      %952 = vmatpush1.msra.mxu0 %v907
      %953 = vmatprep.subr.mxu0 0.0
      %954 = vmatpush1.msra.mxu0 %v906
      %955 = vmatprep.subr.mxu0 0.0
      %956 = vmatpush1.msra.mxu0 %v905
      %957 = vmatprep.subr.mxu0 0.0
      %958 = vmatpush1.msra.mxu0 %v904
      %959 = vmatprep.subr.mxu0 0.0
      %960 = vmatpush2.msra.mxu0 0.0
      %961 = vmatprep.subr.mxu0 0.0
      %962 = vmatpush2.msra.mxu0 0.0
      %963 = vmatprep.subr.mxu0 0.0
      %964 = vmatpush2.msra.mxu0 0.0
      %965 = vmatprep.subr.mxu0 0.0
      %966 = vmatpush2.msra.mxu0 0.0
      %967 = vmatprep.subr.mxu0 0.0
      %968 = vmatpush2.msra.mxu0 0.0
      %969 = vmatprep.subr.mxu0 0.0
      %970 = vmatpush2.msra.mxu0 0.0
      %971 = vmatprep.subr.mxu0 0.0
      %972 = vmatpush2.msra.mxu0 0.0
      %973 = vmatprep.subr.mxu0 0.0
      %974 = vmatpush2.msra.mxu0 0.0
      %975 = vmatprep.subr.mxu0 0.0
      %976 = vmatpush2.msra.mxu0 0.0
      %977 = vmatprep.subr.mxu0 0.0
      %978 = vmatpush2.msra.mxu0 0.0
      %979 = vmatprep.subr.mxu0 0.0
      %980 = vmatpush2.msra.mxu0 0.0
      %981 = vmatprep.subr.mxu0 0.0
      %982 = vmatpush2.msra.mxu0 0.0
      %983 = vmatprep.subr.mxu0 0.0
      %984 = vmatpush2.msra.mxu0 0.0
      %985 = vmatprep.subr.mxu0 0.0
      %986 = vmatpush2.msra.mxu0 0.0
      %987 = vmatprep.subr.mxu0 0.0
      %988 = vmatpush2.msra.mxu0 0.0
      %989 = vmatprep.subr.mxu0 0.0
      %990 = vmatpush2.msra.mxu0 0.0
      %991 = vmatprep.mubr.f32.mxu0 0.0
      %992 = vmatmul.mubr.f32.gmra.mxu0 %v913
      %v993 = vpop.f32.mrf.mxu0
      %v994 = vadd.f32 0.0, %v993
      %v995 = vpop.f32.mrf.mxu0
      %996 = vmatprep.mubr.f32.mxu0 0.0
      %997 = vmatmul.mubr.f32.gmra.mxu0 %v916
      %v998 = vpop.f32.mrf.mxu0
      %v999 = vadd.f32 0.0, %v998
      %v1000 = vpop.f32.mrf.mxu0
      %1001 = vmatprep.mubr.f32.mxu0 0.0
      %1002 = vmatmul.mubr.f32.gmra.mxu0 %v919
      %v1003 = vpop.f32.mrf.mxu0
      %v1004 = vadd.f32 0.0, %v1003
      %v1005 = vpop.f32.mrf.mxu0
      %1006 = vmatprep.mubr.f32.mxu0 0.0
      %1007 = vmatmul.mubr.f32.gmra.mxu0 %v922
      %v1008 = vpop.f32.mrf.mxu0
      %v1009 = vadd.f32 0.0, %v1008
      %v1010 = vpop.f32.mrf.mxu0
      %1011 = vmatprep.mubr.f32.mxu0 0.0
      %1012 = vmatmul.mubr.f32.gmra.mxu0 %v925
      %v1013 = vpop.f32.mrf.mxu0
      %v1014 = vadd.f32 0.0, %v1013
      %v1015 = vpop.f32.mrf.mxu0
      %1016 = vdwg.mxu0
      %v1017 = vadd.f32 %v893, %v994
      %v1018 = vadd.f32 %v894, %v999
      %v1019 = vadd.f32 %v895, %v1004
      %v1020 = vadd.f32 %v896, %v1009
      %v1021 = vadd.f32 %v897, %v1014
      %v1022 = vld [vmem:[#allocation2 + $0x17] sm:$0xff]
      %v1023 = vld [vmem:[#allocation2 + $0x1f] sm:$0xff]
      %v1024 = vld [vmem:[#allocation2 + $0x27] sm:$0xff]
      %v1025 = vld [vmem:[#allocation2 + $0x2f] sm:$0xff]
      %v1026 = vld [vmem:[#allocation2 + $0x37] sm:$0xff]
      %s1027 = scalar_lea.vmem %s3, 384
      %v1028 = vld [vmem:[%s1027] sm:$0xff]
      %v1029 = vld [vmem:[%s1027 + $0x8] sm:$0xff]
      %v1030 = vld [vmem:[%s1027 + $0x10] sm:$0xff]
      %v1031 = vld [vmem:[%s1027 + $0x18] sm:$0xff]
      %v1032 = vld [vmem:[%s1027 + $0x20] sm:$0xff]
      %v1033 = vld [vmem:[%s1027 + $0x28] sm:$0xff]
      %v1034 = vld [vmem:[%s1027 + $0x30] sm:$0xff]
      %v1035 = vld [vmem:[%s1027 + $0x38] sm:$0xff]
      %v1037 = vsel %vm268, %v1022, 0
      %v1040 = vsel %vm268, %v1023, 0
      %v1043 = vsel %vm268, %v1024, 0
      %v1046 = vsel %vm268, %v1025, 0
      %v1049 = vsel %vm268, %v1026, 0
      %1051 = vmatprep.subr.mxu0 0.0
      %1052 = vmatpush1.msra.mxu0 0.0
      %1053 = vmatprep.subr.mxu0 0.0
      %1054 = vmatpush1.msra.mxu0 0.0
      %1055 = vmatprep.subr.mxu0 0.0
      %1056 = vmatpush1.msra.mxu0 0.0
      %1057 = vmatprep.subr.mxu0 0.0
      %1058 = vmatpush1.msra.mxu0 0.0
      %1059 = vmatprep.subr.mxu0 0.0
      %1060 = vmatpush1.msra.mxu0 0.0
      %1061 = vmatprep.subr.mxu0 0.0
      %1062 = vmatpush1.msra.mxu0 0.0
      %1063 = vmatprep.subr.mxu0 0.0
      %1064 = vmatpush1.msra.mxu0 0.0
      %1065 = vmatprep.subr.mxu0 0.0
      %1066 = vmatpush1.msra.mxu0 0.0
      %1067 = vmatprep.subr.mxu0 0.0
      %1068 = vmatpush1.msra.mxu0 %v1035
      %1069 = vmatprep.subr.mxu0 0.0
      %1070 = vmatpush1.msra.mxu0 %v1034
      %1071 = vmatprep.subr.mxu0 0.0
      %1072 = vmatpush1.msra.mxu0 %v1033
      %1073 = vmatprep.subr.mxu0 0.0
      %1074 = vmatpush1.msra.mxu0 %v1032
      %1075 = vmatprep.subr.mxu0 0.0
      %1076 = vmatpush1.msra.mxu0 %v1031
      %1077 = vmatprep.subr.mxu0 0.0
      %1078 = vmatpush1.msra.mxu0 %v1030
      %1079 = vmatprep.subr.mxu0 0.0
      %1080 = vmatpush1.msra.mxu0 %v1029
      %1081 = vmatprep.subr.mxu0 0.0
      %1082 = vmatpush1.msra.mxu0 %v1028
      %1083 = vmatprep.subr.mxu0 0.0
      %1084 = vmatpush2.msra.mxu0 0.0
      %1085 = vmatprep.subr.mxu0 0.0
      %1086 = vmatpush2.msra.mxu0 0.0
      %1087 = vmatprep.subr.mxu0 0.0
      %1088 = vmatpush2.msra.mxu0 0.0
      %1089 = vmatprep.subr.mxu0 0.0
      %1090 = vmatpush2.msra.mxu0 0.0
      %1091 = vmatprep.subr.mxu0 0.0
      %1092 = vmatpush2.msra.mxu0 0.0
      %1093 = vmatprep.subr.mxu0 0.0
      %1094 = vmatpush2.msra.mxu0 0.0
      %1095 = vmatprep.subr.mxu0 0.0
      %1096 = vmatpush2.msra.mxu0 0.0
      %1097 = vmatprep.subr.mxu0 0.0
      %1098 = vmatpush2.msra.mxu0 0.0
      %1099 = vmatprep.subr.mxu0 0.0
      %1100 = vmatpush2.msra.mxu0 0.0
      %1101 = vmatprep.subr.mxu0 0.0
      %1102 = vmatpush2.msra.mxu0 0.0
      %1103 = vmatprep.subr.mxu0 0.0
      %1104 = vmatpush2.msra.mxu0 0.0
      %1105 = vmatprep.subr.mxu0 0.0
      %1106 = vmatpush2.msra.mxu0 0.0
      %1107 = vmatprep.subr.mxu0 0.0
      %1108 = vmatpush2.msra.mxu0 0.0
      %1109 = vmatprep.subr.mxu0 0.0
      %1110 = vmatpush2.msra.mxu0 0.0
      %1111 = vmatprep.subr.mxu0 0.0
      %1112 = vmatpush2.msra.mxu0 0.0
      %1113 = vmatprep.subr.mxu0 0.0
      %1114 = vmatpush2.msra.mxu0 0.0
      %1115 = vmatprep.mubr.f32.mxu0 0.0
      %1116 = vmatmul.mubr.f32.gmra.mxu0 %v1037
      %v1117 = vpop.f32.mrf.mxu0
      %v1118 = vadd.f32 0.0, %v1117
      %v1119 = vpop.f32.mrf.mxu0
      %1120 = vmatprep.mubr.f32.mxu0 0.0
      %1121 = vmatmul.mubr.f32.gmra.mxu0 %v1040
      %v1122 = vpop.f32.mrf.mxu0
      %v1123 = vadd.f32 0.0, %v1122
      %v1124 = vpop.f32.mrf.mxu0
      %1125 = vmatprep.mubr.f32.mxu0 0.0
      %1126 = vmatmul.mubr.f32.gmra.mxu0 %v1043
      %v1127 = vpop.f32.mrf.mxu0
      %v1128 = vadd.f32 0.0, %v1127
      %v1129 = vpop.f32.mrf.mxu0
      %1130 = vmatprep.mubr.f32.mxu0 0.0
      %1131 = vmatmul.mubr.f32.gmra.mxu0 %v1046
      %v1132 = vpop.f32.mrf.mxu0
      %v1133 = vadd.f32 0.0, %v1132
      %v1134 = vpop.f32.mrf.mxu0
      %1135 = vmatprep.mubr.f32.mxu0 0.0
      %1136 = vmatmul.mubr.f32.gmra.mxu0 %v1049
      %v1137 = vpop.f32.mrf.mxu0
      %v1138 = vadd.f32 0.0, %v1137
      %v1139 = vpop.f32.mrf.mxu0
      %1140 = vdwg.mxu0
      %v1141 = vadd.f32 %v1017, %v1118
      %v1142 = vadd.f32 %v1018, %v1123
      %v1143 = vadd.f32 %v1019, %v1128
      %v1144 = vadd.f32 %v1020, %v1133
      %v1145 = vadd.f32 %v1021, %v1138
      %v1146 = vld [vmem:[#allocation2 + $0x18] sm:$0xff]
      %v1147 = vld [vmem:[#allocation2 + $0x20] sm:$0xff]
      %v1148 = vld [vmem:[#allocation2 + $0x28] sm:$0xff]
      %v1149 = vld [vmem:[#allocation2 + $0x30] sm:$0xff]
      %v1150 = vld [vmem:[#allocation2 + $0x38] sm:$0xff]
      %s1151 = scalar_lea.vmem %s3, 448
      %v1152 = vld [vmem:[%s1151] sm:$0xff]
      %v1153 = vld [vmem:[%s1151 + $0x8] sm:$0xff]
      %v1154 = vld [vmem:[%s1151 + $0x10] sm:$0xff]
      %v1155 = vld [vmem:[%s1151 + $0x18] sm:$0xff]
      %v1156 = vld [vmem:[%s1151 + $0x20] sm:$0xff]
      %v1157 = vld [vmem:[%s1151 + $0x28] sm:$0xff]
      %v1158 = vld [vmem:[%s1151 + $0x30] sm:$0xff]
      %v1159 = vld [vmem:[%s1151 + $0x38] sm:$0xff]
      %v1161 = vsel %vm268, %v1146, 0
      %v1164 = vsel %vm268, %v1147, 0
      %v1167 = vsel %vm268, %v1148, 0
      %v1170 = vsel %vm268, %v1149, 0
      %v1173 = vsel %vm268, %v1150, 0
      %1175 = vmatprep.subr.mxu0 0.0
      %1176 = vmatpush1.msra.mxu0 0.0
      %1177 = vmatprep.subr.mxu0 0.0
      %1178 = vmatpush1.msra.mxu0 0.0
      %1179 = vmatprep.subr.mxu0 0.0
      %1180 = vmatpush1.msra.mxu0 0.0
      %1181 = vmatprep.subr.mxu0 0.0
      %1182 = vmatpush1.msra.mxu0 0.0
      %1183 = vmatprep.subr.mxu0 0.0
      %1184 = vmatpush1.msra.mxu0 0.0
      %1185 = vmatprep.subr.mxu0 0.0
      %1186 = vmatpush1.msra.mxu0 0.0
      %1187 = vmatprep.subr.mxu0 0.0
      %1188 = vmatpush1.msra.mxu0 0.0
      %1189 = vmatprep.subr.mxu0 0.0
      %1190 = vmatpush1.msra.mxu0 0.0
      %1191 = vmatprep.subr.mxu0 0.0
      %1192 = vmatpush1.msra.mxu0 %v1159
      %1193 = vmatprep.subr.mxu0 0.0
      %1194 = vmatpush1.msra.mxu0 %v1158
      %1195 = vmatprep.subr.mxu0 0.0
      %1196 = vmatpush1.msra.mxu0 %v1157
      %1197 = vmatprep.subr.mxu0 0.0
      %1198 = vmatpush1.msra.mxu0 %v1156
      %1199 = vmatprep.subr.mxu0 0.0
      %1200 = vmatpush1.msra.mxu0 %v1155
      %1201 = vmatprep.subr.mxu0 0.0
      %1202 = vmatpush1.msra.mxu0 %v1154
      %1203 = vmatprep.subr.mxu0 0.0
      %1204 = vmatpush1.msra.mxu0 %v1153
      %1205 = vmatprep.subr.mxu0 0.0
      %1206 = vmatpush1.msra.mxu0 %v1152
      %1207 = vmatprep.subr.mxu0 0.0
      %1208 = vmatpush2.msra.mxu0 0.0
      %1209 = vmatprep.subr.mxu0 0.0
      %1210 = vmatpush2.msra.mxu0 0.0
      %1211 = vmatprep.subr.mxu0 0.0
      %1212 = vmatpush2.msra.mxu0 0.0
      %1213 = vmatprep.subr.mxu0 0.0
      %1214 = vmatpush2.msra.mxu0 0.0
      %1215 = vmatprep.subr.mxu0 0.0
      %1216 = vmatpush2.msra.mxu0 0.0
      %1217 = vmatprep.subr.mxu0 0.0
      %1218 = vmatpush2.msra.mxu0 0.0
      %1219 = vmatprep.subr.mxu0 0.0
      %1220 = vmatpush2.msra.mxu0 0.0
      %1221 = vmatprep.subr.mxu0 0.0
      %1222 = vmatpush2.msra.mxu0 0.0
      %1223 = vmatprep.subr.mxu0 0.0
      %1224 = vmatpush2.msra.mxu0 0.0
      %1225 = vmatprep.subr.mxu0 0.0
      %1226 = vmatpush2.msra.mxu0 0.0
      %1227 = vmatprep.subr.mxu0 0.0
      %1228 = vmatpush2.msra.mxu0 0.0
      %1229 = vmatprep.subr.mxu0 0.0
      %1230 = vmatpush2.msra.mxu0 0.0
      %1231 = vmatprep.subr.mxu0 0.0
      %1232 = vmatpush2.msra.mxu0 0.0
      %1233 = vmatprep.subr.mxu0 0.0
      %1234 = vmatpush2.msra.mxu0 0.0
      %1235 = vmatprep.subr.mxu0 0.0
      %1236 = vmatpush2.msra.mxu0 0.0
      %1237 = vmatprep.subr.mxu0 0.0
      %1238 = vmatpush2.msra.mxu0 0.0
      %1239 = vmatprep.mubr.f32.mxu0 0.0
      %1240 = vmatmul.mubr.f32.gmra.mxu0 %v1161
      %v1241 = vpop.f32.mrf.mxu0
      %v1242 = vadd.f32 0.0, %v1241
      %v1243 = vpop.f32.mrf.mxu0
      %1244 = vmatprep.mubr.f32.mxu0 0.0
      %1245 = vmatmul.mubr.f32.gmra.mxu0 %v1164
      %v1246 = vpop.f32.mrf.mxu0
      %v1247 = vadd.f32 0.0, %v1246
      %v1248 = vpop.f32.mrf.mxu0
      %1249 = vmatprep.mubr.f32.mxu0 0.0
      %1250 = vmatmul.mubr.f32.gmra.mxu0 %v1167
      %v1251 = vpop.f32.mrf.mxu0
      %v1252 = vadd.f32 0.0, %v1251
      %v1253 = vpop.f32.mrf.mxu0
      %1254 = vmatprep.mubr.f32.mxu0 0.0
      %1255 = vmatmul.mubr.f32.gmra.mxu0 %v1170
      %v1256 = vpop.f32.mrf.mxu0
      %v1257 = vadd.f32 0.0, %v1256
      %v1258 = vpop.f32.mrf.mxu0
      %1259 = vmatprep.mubr.f32.mxu0 0.0
      %1260 = vmatmul.mubr.f32.gmra.mxu0 %v1173
      %v1261 = vpop.f32.mrf.mxu0
      %v1262 = vadd.f32 0.0, %v1261
      %v1263 = vpop.f32.mrf.mxu0
      %1264 = vdwg.mxu0
      %v1265 = vadd.f32 %v1141, %v1242
      %v1266 = vadd.f32 %v1142, %v1247
      %v1267 = vadd.f32 %v1143, %v1252
      %v1268 = vadd.f32 %v1144, %v1257
      %v1269 = vadd.f32 %v1145, %v1262
      %v1270 = vld [vmem:[#allocation2 + $0x19] sm:$0xff]
      %v1271 = vld [vmem:[#allocation2 + $0x21] sm:$0xff]
      %v1272 = vld [vmem:[#allocation2 + $0x29] sm:$0xff]
      %v1273 = vld [vmem:[#allocation2 + $0x31] sm:$0xff]
      %v1274 = vld [vmem:[#allocation2 + $0x39] sm:$0xff]
      %s1275 = scalar_lea.vmem %s3, 512
      %v1276 = vld [vmem:[%s1275] sm:$0xff]
      %v1277 = vld [vmem:[%s1275 + $0x8] sm:$0xff]
      %v1278 = vld [vmem:[%s1275 + $0x10] sm:$0xff]
      %v1279 = vld [vmem:[%s1275 + $0x18] sm:$0xff]
      %v1280 = vld [vmem:[%s1275 + $0x20] sm:$0xff]
      %v1281 = vld [vmem:[%s1275 + $0x28] sm:$0xff]
      %v1282 = vld [vmem:[%s1275 + $0x30] sm:$0xff]
      %v1283 = vld [vmem:[%s1275 + $0x38] sm:$0xff]
      %v1285 = vsel %vm268, %v1270, 0
      %v1288 = vsel %vm268, %v1271, 0
      %v1291 = vsel %vm268, %v1272, 0
      %v1294 = vsel %vm268, %v1273, 0
      %v1297 = vsel %vm268, %v1274, 0
      %1299 = vmatprep.subr.mxu0 0.0
      %1300 = vmatpush1.msra.mxu0 0.0
      %1301 = vmatprep.subr.mxu0 0.0
      %1302 = vmatpush1.msra.mxu0 0.0
      %1303 = vmatprep.subr.mxu0 0.0
      %1304 = vmatpush1.msra.mxu0 0.0
      %1305 = vmatprep.subr.mxu0 0.0
      %1306 = vmatpush1.msra.mxu0 0.0
      %1307 = vmatprep.subr.mxu0 0.0
      %1308 = vmatpush1.msra.mxu0 0.0
      %1309 = vmatprep.subr.mxu0 0.0
      %1310 = vmatpush1.msra.mxu0 0.0
      %1311 = vmatprep.subr.mxu0 0.0
      %1312 = vmatpush1.msra.mxu0 0.0
      %1313 = vmatprep.subr.mxu0 0.0
      %1314 = vmatpush1.msra.mxu0 0.0
      %1315 = vmatprep.subr.mxu0 0.0
      %1316 = vmatpush1.msra.mxu0 %v1283
      %1317 = vmatprep.subr.mxu0 0.0
      %1318 = vmatpush1.msra.mxu0 %v1282
      %1319 = vmatprep.subr.mxu0 0.0
      %1320 = vmatpush1.msra.mxu0 %v1281
      %1321 = vmatprep.subr.mxu0 0.0
      %1322 = vmatpush1.msra.mxu0 %v1280
      %1323 = vmatprep.subr.mxu0 0.0
      %1324 = vmatpush1.msra.mxu0 %v1279
      %1325 = vmatprep.subr.mxu0 0.0
      %1326 = vmatpush1.msra.mxu0 %v1278
      %1327 = vmatprep.subr.mxu0 0.0
      %1328 = vmatpush1.msra.mxu0 %v1277
      %1329 = vmatprep.subr.mxu0 0.0
      %1330 = vmatpush1.msra.mxu0 %v1276
      %1331 = vmatprep.subr.mxu0 0.0
      %1332 = vmatpush2.msra.mxu0 0.0
      %1333 = vmatprep.subr.mxu0 0.0
      %1334 = vmatpush2.msra.mxu0 0.0
      %1335 = vmatprep.subr.mxu0 0.0
      %1336 = vmatpush2.msra.mxu0 0.0
      %1337 = vmatprep.subr.mxu0 0.0
      %1338 = vmatpush2.msra.mxu0 0.0
      %1339 = vmatprep.subr.mxu0 0.0
      %1340 = vmatpush2.msra.mxu0 0.0
      %1341 = vmatprep.subr.mxu0 0.0
      %1342 = vmatpush2.msra.mxu0 0.0
      %1343 = vmatprep.subr.mxu0 0.0
      %1344 = vmatpush2.msra.mxu0 0.0
      %1345 = vmatprep.subr.mxu0 0.0
      %1346 = vmatpush2.msra.mxu0 0.0
      %1347 = vmatprep.subr.mxu0 0.0
      %1348 = vmatpush2.msra.mxu0 0.0
      %1349 = vmatprep.subr.mxu0 0.0
      %1350 = vmatpush2.msra.mxu0 0.0
      %1351 = vmatprep.subr.mxu0 0.0
      %1352 = vmatpush2.msra.mxu0 0.0
      %1353 = vmatprep.subr.mxu0 0.0
      %1354 = vmatpush2.msra.mxu0 0.0
      %1355 = vmatprep.subr.mxu0 0.0
      %1356 = vmatpush2.msra.mxu0 0.0
      %1357 = vmatprep.subr.mxu0 0.0
      %1358 = vmatpush2.msra.mxu0 0.0
      %1359 = vmatprep.subr.mxu0 0.0
      %1360 = vmatpush2.msra.mxu0 0.0
      %1361 = vmatprep.subr.mxu0 0.0
      %1362 = vmatpush2.msra.mxu0 0.0
      %1363 = vmatprep.mubr.f32.mxu0 0.0
      %1364 = vmatmul.mubr.f32.gmra.mxu0 %v1285
      %v1365 = vpop.f32.mrf.mxu0
      %v1366 = vadd.f32 0.0, %v1365
      %v1367 = vpop.f32.mrf.mxu0
      %1368 = vmatprep.mubr.f32.mxu0 0.0
      %1369 = vmatmul.mubr.f32.gmra.mxu0 %v1288
      %v1370 = vpop.f32.mrf.mxu0
      %v1371 = vadd.f32 0.0, %v1370
      %v1372 = vpop.f32.mrf.mxu0
      %1373 = vmatprep.mubr.f32.mxu0 0.0
      %1374 = vmatmul.mubr.f32.gmra.mxu0 %v1291
      %v1375 = vpop.f32.mrf.mxu0
      %v1376 = vadd.f32 0.0, %v1375
      %v1377 = vpop.f32.mrf.mxu0
      %1378 = vmatprep.mubr.f32.mxu0 0.0
      %1379 = vmatmul.mubr.f32.gmra.mxu0 %v1294
      %v1380 = vpop.f32.mrf.mxu0
      %v1381 = vadd.f32 0.0, %v1380
      %v1382 = vpop.f32.mrf.mxu0
      %1383 = vmatprep.mubr.f32.mxu0 0.0
      %1384 = vmatmul.mubr.f32.gmra.mxu0 %v1297
      %v1385 = vpop.f32.mrf.mxu0
      %v1386 = vadd.f32 0.0, %v1385
      %v1387 = vpop.f32.mrf.mxu0
      %1388 = vdwg.mxu0
      %v1389 = vadd.f32 %v1265, %v1366
      %v1390 = vadd.f32 %v1266, %v1371
      %v1391 = vadd.f32 %v1267, %v1376
      %v1392 = vadd.f32 %v1268, %v1381
      %v1393 = vadd.f32 %v1269, %v1386
      %v1395 = vlaneseq
      %v1396 = vshrl.u32 %v1395, 7
      %v1397 = vsub.s32 0, %v1396
      %v1398 = vrot.slane %v278, %v1397
      %v1400 = vadd.f32 %v1389, %v1398
      %v1401 = vadd.f32 %v1390, %v1398
      %v1402 = vadd.f32 %v1391, %v1398
      %v1403 = vadd.f32 %v1392, %v1398
      %v1404 = vadd.f32 %v1393, %v1398
      %v1405 = vmax.f32 %v1400, 0.0
      %v1406 = vmax.f32 %v1401, 0.0
      %v1407 = vmax.f32 %v1402, 0.0
      %v1408 = vmax.f32 %v1403, 0.0
      %v1409 = vmax.f32 %v1404, 0.0
      %1415 = vrot.lane.b32.xlu0 %v1405, 112
      %v1416 = vpop.permute.xlu0 %1415
      %1417 = vrot.lane.b32.xlu0 %v1406, 112
      %v1418 = vpop.permute.xlu0 %1417
      %1419 = vrot.lane.b32.xlu0 %v1407, 112
      %v1420 = vpop.permute.xlu0 %1419
      %1421 = vrot.lane.b32.xlu0 %v1408, 112
      %v1422 = vpop.permute.xlu0 %1421
      %1423 = vrot.lane.b32.xlu0 %v1409, 112
      %v1424 = vpop.permute.xlu0 %1423
      %v1430 = vmax.f32 %v1405, %v1416
      %v1431 = vmax.f32 %v1406, %v1418
      %v1432 = vmax.f32 %v1407, %v1420
      %v1433 = vmax.f32 %v1408, %v1422
      %v1434 = vmax.f32 %v1409, %v1424
      %1440 = vrot.lane.b32.xlu0 %v1430, 96
      %v1441 = vpop.permute.xlu0 %1440
      %1442 = vrot.lane.b32.xlu0 %v1431, 96
      %v1443 = vpop.permute.xlu0 %1442
      %1444 = vrot.lane.b32.xlu0 %v1432, 96
      %v1445 = vpop.permute.xlu0 %1444
      %1446 = vrot.lane.b32.xlu0 %v1433, 96
      %v1447 = vpop.permute.xlu0 %1446
      %1448 = vrot.lane.b32.xlu0 %v1434, 96
      %v1449 = vpop.permute.xlu0 %1448
      %v1455 = vmax.f32 %v1430, %v1441
      %v1456 = vmax.f32 %v1431, %v1443
      %v1457 = vmax.f32 %v1432, %v1445
      %v1458 = vmax.f32 %v1433, %v1447
      %v1459 = vmax.f32 %v1434, %v1449
      %v1460 = vld [vmem:[%s2] sm:$0xff]
      %v1461 = vld [vmem:[%s2 + $0x8] sm:$0xff]
      %v1462 = vld [vmem:[%s2 + $0x10] sm:$0xff]
      %v1463 = vld [vmem:[%s2 + $0x18] sm:$0xff]
      %v1464 = vld [vmem:[%s2 + $0x20] sm:$0xff]
      %1466 = vset.pattern.permute.xlu0 0
      %1467 = vperm.xlu0 %1466, %v1460
      %v1468 = vpop.permute.xlu0 %1467
      %1471 = vset.pattern.permute.xlu0 0
      %1472 = vperm.xlu0 %1471, %v1461
      %v1473 = vpop.permute.xlu0 %1472
      %1476 = vset.pattern.permute.xlu0 0
      %1477 = vperm.xlu0 %1476, %v1462
      %v1478 = vpop.permute.xlu0 %1477
      %1481 = vset.pattern.permute.xlu0 0
      %1482 = vperm.xlu0 %1481, %v1463
      %v1483 = vpop.permute.xlu0 %1482
      %1486 = vset.pattern.permute.xlu0 0
      %1487 = vperm.xlu0 %1486, %v1464
      %v1488 = vpop.permute.xlu0 %1487
      %v1490 = vmul.f32 %v1455, %v1468
      %v1491 = vmul.f32 %v1456, %v1473
      %v1492 = vmul.f32 %v1457, %v1478
      %v1493 = vmul.f32 %v1458, %v1483
      %v1494 = vmul.f32 %v1459, %v1488
      %1495 = vst.msk [vmem:[#allocation3 + $0x10] sm:$0xff] %vm273, %v1490
      %1496 = vst.msk [vmem:[#allocation3 + $0x18] sm:$0xff] %vm273, %v1491
      %1497 = vst.msk [vmem:[#allocation3 + $0x20] sm:$0xff] %vm273, %v1492
      %1498 = vst.msk [vmem:[#allocation3 + $0x28] sm:$0xff] %vm273, %v1493
      %1499 = vst.msk [vmem:[#allocation3 + $0x30] sm:$0xff] %vm273, %v1494
      %v1500 = vld [vmem:[#allocation3 + $0x7] sm:$0xff]
      %v1501 = vld [vmem:[#allocation3 + $0xf] sm:$0xff]
      %v1502 = vld [vmem:[#allocation3 + $0x17] sm:$0xff]
      %v1503 = vld [vmem:[#allocation3 + $0x1f] sm:$0xff]
      %v1504 = vld [vmem:[#allocation3 + $0x27] sm:$0xff]
      %v1505 = vld [vmem:[%s4] sm:$0xff]
      %v1506 = vld [vmem:[%s4 + $0x8] sm:$0xff]
      %v1507 = vld [vmem:[#allocation3 + $0x8] sm:$0xff]
      %v1508 = vld [vmem:[#allocation3 + $0x10] sm:$0xff]
      %v1509 = vld [vmem:[#allocation3 + $0x18] sm:$0xff]
      %v1510 = vld [vmem:[#allocation3 + $0x20] sm:$0xff]
      %v1511 = vld [vmem:[#allocation3 + $0x28] sm:$0xff]
      %s1512 = scalar_lea.vmem %s4, 16
      %v1513 = vld [vmem:[%s1512] sm:$0xff]
      %v1514 = vld [vmem:[%s1512 + $0x8] sm:$0xff]
      %v1516 = vsel %vm273, %v1507, 0
      %v1519 = vsel %vm273, %v1508, 0
      %v1522 = vsel %vm273, %v1509, 0
      %v1525 = vsel %vm273, %v1510, 0
      %v1528 = vsel %vm273, %v1511, 0
      %1530 = vmatprep.subr.mxu0 0.0
      %1531 = vmatpush1.msra.mxu0 0.0
      %1532 = vmatprep.subr.mxu0 0.0
      %1533 = vmatpush1.msra.mxu0 0.0
      %1534 = vmatprep.subr.mxu0 0.0
      %1535 = vmatpush1.msra.mxu0 0.0
      %1536 = vmatprep.subr.mxu0 0.0
      %1537 = vmatpush1.msra.mxu0 0.0
      %1538 = vmatprep.subr.mxu0 0.0
      %1539 = vmatpush1.msra.mxu0 0.0
      %1540 = vmatprep.subr.mxu0 0.0
      %1541 = vmatpush1.msra.mxu0 0.0
      %1542 = vmatprep.subr.mxu0 0.0
      %1543 = vmatpush1.msra.mxu0 0.0
      %1544 = vmatprep.subr.mxu0 0.0
      %1545 = vmatpush1.msra.mxu0 0.0
      %1546 = vmatprep.subr.mxu0 0.0
      %1547 = vmatpush1.msra.mxu0 0.0
      %1548 = vmatprep.subr.mxu0 0.0
      %1549 = vmatpush1.msra.mxu0 0.0
      %1550 = vmatprep.subr.mxu0 0.0
      %1551 = vmatpush1.msra.mxu0 0.0
      %1552 = vmatprep.subr.mxu0 0.0
      %1553 = vmatpush1.msra.mxu0 0.0
      %1554 = vmatprep.subr.mxu0 0.0
      %1555 = vmatpush1.msra.mxu0 0.0
      %1556 = vmatprep.subr.mxu0 0.0
      %1557 = vmatpush1.msra.mxu0 0.0
      %1558 = vmatprep.subr.mxu0 0.0
      %1559 = vmatpush1.msra.mxu0 %v1514
      %1560 = vmatprep.subr.mxu0 0.0
      %1561 = vmatpush1.msra.mxu0 %v1513
      %1562 = vmatprep.subr.mxu0 0.0
      %1563 = vmatpush2.msra.mxu0 0.0
      %1564 = vmatprep.subr.mxu0 0.0
      %1565 = vmatpush2.msra.mxu0 0.0
      %1566 = vmatprep.subr.mxu0 0.0
      %1567 = vmatpush2.msra.mxu0 0.0
      %1568 = vmatprep.subr.mxu0 0.0
      %1569 = vmatpush2.msra.mxu0 0.0
      %1570 = vmatprep.subr.mxu0 0.0
      %1571 = vmatpush2.msra.mxu0 0.0
      %1572 = vmatprep.subr.mxu0 0.0
      %1573 = vmatpush2.msra.mxu0 0.0
      %1574 = vmatprep.subr.mxu0 0.0
      %1575 = vmatpush2.msra.mxu0 0.0
      %1576 = vmatprep.subr.mxu0 0.0
      %1577 = vmatpush2.msra.mxu0 0.0
      %1578 = vmatprep.subr.mxu0 0.0
      %1579 = vmatpush2.msra.mxu0 0.0
      %1580 = vmatprep.subr.mxu0 0.0
      %1581 = vmatpush2.msra.mxu0 0.0
      %1582 = vmatprep.subr.mxu0 0.0
      %1583 = vmatpush2.msra.mxu0 0.0
      %1584 = vmatprep.subr.mxu0 0.0
      %1585 = vmatpush2.msra.mxu0 0.0
      %1586 = vmatprep.subr.mxu0 0.0
      %1587 = vmatpush2.msra.mxu0 0.0
      %1588 = vmatprep.subr.mxu0 0.0
      %1589 = vmatpush2.msra.mxu0 0.0
      %1590 = vmatprep.subr.mxu0 0.0
      %1591 = vmatpush2.msra.mxu0 0.0
      %1592 = vmatprep.subr.mxu0 0.0
      %1593 = vmatpush2.msra.mxu0 0.0
      %1594 = vmatprep.mubr.f32.mxu0 0.0
      %1595 = vmatmul.mubr.f32.gmra.mxu0 %v1516
      %v1596 = vpop.f32.mrf.mxu0
      %v1597 = vadd.f32 0.0, %v1596
      %v1598 = vpop.f32.mrf.mxu0
      %1599 = vmatprep.mubr.f32.mxu0 0.0
      %1600 = vmatmul.mubr.f32.gmra.mxu0 %v1519
      %v1601 = vpop.f32.mrf.mxu0
      %v1602 = vadd.f32 0.0, %v1601
      %v1603 = vpop.f32.mrf.mxu0
      %1604 = vmatprep.mubr.f32.mxu0 0.0
      %1605 = vmatmul.mubr.f32.gmra.mxu0 %v1522
      %v1606 = vpop.f32.mrf.mxu0
      %v1607 = vadd.f32 0.0, %v1606
      %v1608 = vpop.f32.mrf.mxu0
      %1609 = vmatprep.mubr.f32.mxu0 0.0
      %1610 = vmatmul.mubr.f32.gmra.mxu0 %v1525
      %v1611 = vpop.f32.mrf.mxu0
      %v1612 = vadd.f32 0.0, %v1611
      %v1613 = vpop.f32.mrf.mxu0
      %1614 = vmatprep.mubr.f32.mxu0 0.0
      %1615 = vmatmul.mubr.f32.gmra.mxu0 %v1528
      %v1616 = vpop.f32.mrf.mxu0
      %v1617 = vadd.f32 0.0, %v1616
      %v1618 = vpop.f32.mrf.mxu0
      %1619 = vdwg.mxu0
      %v1621 = vsel %vm273, %v1500, 0
      %v1624 = vsel %vm273, %v1501, 0
      %v1627 = vsel %vm273, %v1502, 0
      %v1630 = vsel %vm273, %v1503, 0
      %v1633 = vsel %vm273, %v1504, 0
      %1635 = vmatprep.subr.mxu0 0.0
      %1636 = vmatpush1.msra.mxu0 0.0
      %1637 = vmatprep.subr.mxu0 0.0
      %1638 = vmatpush1.msra.mxu0 0.0
      %1639 = vmatprep.subr.mxu0 0.0
      %1640 = vmatpush1.msra.mxu0 0.0
      %1641 = vmatprep.subr.mxu0 0.0
      %1642 = vmatpush1.msra.mxu0 0.0
      %1643 = vmatprep.subr.mxu0 0.0
      %1644 = vmatpush1.msra.mxu0 0.0
      %1645 = vmatprep.subr.mxu0 0.0
      %1646 = vmatpush1.msra.mxu0 0.0
      %1647 = vmatprep.subr.mxu0 0.0
      %1648 = vmatpush1.msra.mxu0 0.0
      %1649 = vmatprep.subr.mxu0 0.0
      %1650 = vmatpush1.msra.mxu0 0.0
      %1651 = vmatprep.subr.mxu0 0.0
      %1652 = vmatpush1.msra.mxu0 0.0
      %1653 = vmatprep.subr.mxu0 0.0
      %1654 = vmatpush1.msra.mxu0 0.0
      %1655 = vmatprep.subr.mxu0 0.0
      %1656 = vmatpush1.msra.mxu0 0.0
      %1657 = vmatprep.subr.mxu0 0.0
      %1658 = vmatpush1.msra.mxu0 0.0
      %1659 = vmatprep.subr.mxu0 0.0
      %1660 = vmatpush1.msra.mxu0 0.0
      %1661 = vmatprep.subr.mxu0 0.0
      %1662 = vmatpush1.msra.mxu0 0.0
      %1663 = vmatprep.subr.mxu0 0.0
      %1664 = vmatpush1.msra.mxu0 %v1506
      %1665 = vmatprep.subr.mxu0 0.0
      %1666 = vmatpush1.msra.mxu0 %v1505
      %1667 = vmatprep.subr.mxu0 0.0
      %1668 = vmatpush2.msra.mxu0 0.0
      %1669 = vmatprep.subr.mxu0 0.0
      %1670 = vmatpush2.msra.mxu0 0.0
      %1671 = vmatprep.subr.mxu0 0.0
      %1672 = vmatpush2.msra.mxu0 0.0
      %1673 = vmatprep.subr.mxu0 0.0
      %1674 = vmatpush2.msra.mxu0 0.0
      %1675 = vmatprep.subr.mxu0 0.0
      %1676 = vmatpush2.msra.mxu0 0.0
      %1677 = vmatprep.subr.mxu0 0.0
      %1678 = vmatpush2.msra.mxu0 0.0
      %1679 = vmatprep.subr.mxu0 0.0
      %1680 = vmatpush2.msra.mxu0 0.0
      %1681 = vmatprep.subr.mxu0 0.0
      %1682 = vmatpush2.msra.mxu0 0.0
      %1683 = vmatprep.subr.mxu0 0.0
      %1684 = vmatpush2.msra.mxu0 0.0
      %1685 = vmatprep.subr.mxu0 0.0
      %1686 = vmatpush2.msra.mxu0 0.0
      %1687 = vmatprep.subr.mxu0 0.0
      %1688 = vmatpush2.msra.mxu0 0.0
      %1689 = vmatprep.subr.mxu0 0.0
      %1690 = vmatpush2.msra.mxu0 0.0
      %1691 = vmatprep.subr.mxu0 0.0
      %1692 = vmatpush2.msra.mxu0 0.0
      %1693 = vmatprep.subr.mxu0 0.0
      %1694 = vmatpush2.msra.mxu0 0.0
      %1695 = vmatprep.subr.mxu0 0.0
      %1696 = vmatpush2.msra.mxu0 0.0
      %1697 = vmatprep.subr.mxu0 0.0
      %1698 = vmatpush2.msra.mxu0 0.0
      %1699 = vmatprep.mubr.f32.mxu0 0.0
      %1700 = vmatmul.mubr.f32.gmra.mxu0 %v1621
      %v1701 = vpop.f32.mrf.mxu0
      %v1702 = vadd.f32 %v1597, %v1701
      %v1703 = vpop.f32.mrf.mxu0
      %1704 = vmatprep.mubr.f32.mxu0 0.0
      %1705 = vmatmul.mubr.f32.gmra.mxu0 %v1624
      %v1706 = vpop.f32.mrf.mxu0
      %v1707 = vadd.f32 %v1602, %v1706
      %v1708 = vpop.f32.mrf.mxu0
      %1709 = vmatprep.mubr.f32.mxu0 0.0
      %1710 = vmatmul.mubr.f32.gmra.mxu0 %v1627
      %v1711 = vpop.f32.mrf.mxu0
      %v1712 = vadd.f32 %v1607, %v1711
      %v1713 = vpop.f32.mrf.mxu0
      %1714 = vmatprep.mubr.f32.mxu0 0.0
      %1715 = vmatmul.mubr.f32.gmra.mxu0 %v1630
      %v1716 = vpop.f32.mrf.mxu0
      %v1717 = vadd.f32 %v1612, %v1716
      %v1718 = vpop.f32.mrf.mxu0
      %1719 = vmatprep.mubr.f32.mxu0 0.0
      %1720 = vmatmul.mubr.f32.gmra.mxu0 %v1633
      %v1721 = vpop.f32.mrf.mxu0
      %v1722 = vadd.f32 %v1617, %v1721
      %v1723 = vpop.f32.mrf.mxu0
      %1724 = vdwg.mxu0
      %v1725 = vld [vmem:[#allocation3 + $0x9] sm:$0xff]
      %v1726 = vld [vmem:[#allocation3 + $0x11] sm:$0xff]
      %v1727 = vld [vmem:[#allocation3 + $0x19] sm:$0xff]
      %v1728 = vld [vmem:[#allocation3 + $0x21] sm:$0xff]
      %v1729 = vld [vmem:[#allocation3 + $0x29] sm:$0xff]
      %s1730 = scalar_lea.vmem %s4, 32
      %v1731 = vld [vmem:[%s1730] sm:$0xff]
      %v1732 = vld [vmem:[%s1730 + $0x8] sm:$0xff]
      %v1734 = vsel %vm273, %v1725, 0
      %v1737 = vsel %vm273, %v1726, 0
      %v1740 = vsel %vm273, %v1727, 0
      %v1743 = vsel %vm273, %v1728, 0
      %v1746 = vsel %vm273, %v1729, 0
      %1748 = vmatprep.subr.mxu0 0.0
      %1749 = vmatpush1.msra.mxu0 0.0
      %1750 = vmatprep.subr.mxu0 0.0
      %1751 = vmatpush1.msra.mxu0 0.0
      %1752 = vmatprep.subr.mxu0 0.0
      %1753 = vmatpush1.msra.mxu0 0.0
      %1754 = vmatprep.subr.mxu0 0.0
      %1755 = vmatpush1.msra.mxu0 0.0
      %1756 = vmatprep.subr.mxu0 0.0
      %1757 = vmatpush1.msra.mxu0 0.0
      %1758 = vmatprep.subr.mxu0 0.0
      %1759 = vmatpush1.msra.mxu0 0.0
      %1760 = vmatprep.subr.mxu0 0.0
      %1761 = vmatpush1.msra.mxu0 0.0
      %1762 = vmatprep.subr.mxu0 0.0
      %1763 = vmatpush1.msra.mxu0 0.0
      %1764 = vmatprep.subr.mxu0 0.0
      %1765 = vmatpush1.msra.mxu0 0.0
      %1766 = vmatprep.subr.mxu0 0.0
      %1767 = vmatpush1.msra.mxu0 0.0
      %1768 = vmatprep.subr.mxu0 0.0
      %1769 = vmatpush1.msra.mxu0 0.0
      %1770 = vmatprep.subr.mxu0 0.0
      %1771 = vmatpush1.msra.mxu0 0.0
      %1772 = vmatprep.subr.mxu0 0.0
      %1773 = vmatpush1.msra.mxu0 0.0
      %1774 = vmatprep.subr.mxu0 0.0
      %1775 = vmatpush1.msra.mxu0 0.0
      %1776 = vmatprep.subr.mxu0 0.0
      %1777 = vmatpush1.msra.mxu0 %v1732
      %1778 = vmatprep.subr.mxu0 0.0
      %1779 = vmatpush1.msra.mxu0 %v1731
      %1780 = vmatprep.subr.mxu0 0.0
      %1781 = vmatpush2.msra.mxu0 0.0
      %1782 = vmatprep.subr.mxu0 0.0
      %1783 = vmatpush2.msra.mxu0 0.0
      %1784 = vmatprep.subr.mxu0 0.0
      %1785 = vmatpush2.msra.mxu0 0.0
      %1786 = vmatprep.subr.mxu0 0.0
      %1787 = vmatpush2.msra.mxu0 0.0
      %1788 = vmatprep.subr.mxu0 0.0
      %1789 = vmatpush2.msra.mxu0 0.0
      %1790 = vmatprep.subr.mxu0 0.0
      %1791 = vmatpush2.msra.mxu0 0.0
      %1792 = vmatprep.subr.mxu0 0.0
      %1793 = vmatpush2.msra.mxu0 0.0
      %1794 = vmatprep.subr.mxu0 0.0
      %1795 = vmatpush2.msra.mxu0 0.0
      %1796 = vmatprep.subr.mxu0 0.0
      %1797 = vmatpush2.msra.mxu0 0.0
      %1798 = vmatprep.subr.mxu0 0.0
      %1799 = vmatpush2.msra.mxu0 0.0
      %1800 = vmatprep.subr.mxu0 0.0
      %1801 = vmatpush2.msra.mxu0 0.0
      %1802 = vmatprep.subr.mxu0 0.0
      %1803 = vmatpush2.msra.mxu0 0.0
      %1804 = vmatprep.subr.mxu0 0.0
      %1805 = vmatpush2.msra.mxu0 0.0
      %1806 = vmatprep.subr.mxu0 0.0
      %1807 = vmatpush2.msra.mxu0 0.0
      %1808 = vmatprep.subr.mxu0 0.0
      %1809 = vmatpush2.msra.mxu0 0.0
      %1810 = vmatprep.subr.mxu0 0.0
      %1811 = vmatpush2.msra.mxu0 0.0
      %1812 = vmatprep.mubr.f32.mxu0 0.0
      %1813 = vmatmul.mubr.f32.gmra.mxu0 %v1734
      %v1814 = vpop.f32.mrf.mxu0
      %v1815 = vadd.f32 0.0, %v1814
      %v1816 = vpop.f32.mrf.mxu0
      %1817 = vmatprep.mubr.f32.mxu0 0.0
      %1818 = vmatmul.mubr.f32.gmra.mxu0 %v1737
      %v1819 = vpop.f32.mrf.mxu0
      %v1820 = vadd.f32 0.0, %v1819
      %v1821 = vpop.f32.mrf.mxu0
      %1822 = vmatprep.mubr.f32.mxu0 0.0
      %1823 = vmatmul.mubr.f32.gmra.mxu0 %v1740
      %v1824 = vpop.f32.mrf.mxu0
      %v1825 = vadd.f32 0.0, %v1824
      %v1826 = vpop.f32.mrf.mxu0
      %1827 = vmatprep.mubr.f32.mxu0 0.0
      %1828 = vmatmul.mubr.f32.gmra.mxu0 %v1743
      %v1829 = vpop.f32.mrf.mxu0
      %v1830 = vadd.f32 0.0, %v1829
      %v1831 = vpop.f32.mrf.mxu0
      %1832 = vmatprep.mubr.f32.mxu0 0.0
      %1833 = vmatmul.mubr.f32.gmra.mxu0 %v1746
      %v1834 = vpop.f32.mrf.mxu0
      %v1835 = vadd.f32 0.0, %v1834
      %v1836 = vpop.f32.mrf.mxu0
      %1837 = vdwg.mxu0
      %v1838 = vadd.f32 %v1702, %v1815
      %v1839 = vadd.f32 %v1707, %v1820
      %v1840 = vadd.f32 %v1712, %v1825
      %v1841 = vadd.f32 %v1717, %v1830
      %v1842 = vadd.f32 %v1722, %v1835
      %v1843 = vld [vmem:[#allocation3 + $0xf] sm:$0xff]
      %v1844 = vld [vmem:[#allocation3 + $0x17] sm:$0xff]
      %v1845 = vld [vmem:[#allocation3 + $0x1f] sm:$0xff]
      %v1846 = vld [vmem:[#allocation3 + $0x27] sm:$0xff]
      %v1847 = vld [vmem:[#allocation3 + $0x2f] sm:$0xff]
      %s1848 = scalar_lea.vmem %s4, 48
      %v1849 = vld [vmem:[%s1848] sm:$0xff]
      %v1850 = vld [vmem:[%s1848 + $0x8] sm:$0xff]
      %v1852 = vsel %vm273, %v1843, 0
      %v1855 = vsel %vm273, %v1844, 0
      %v1858 = vsel %vm273, %v1845, 0
      %v1861 = vsel %vm273, %v1846, 0
      %v1864 = vsel %vm273, %v1847, 0
      %1866 = vmatprep.subr.mxu0 0.0
      %1867 = vmatpush1.msra.mxu0 0.0
      %1868 = vmatprep.subr.mxu0 0.0
      %1869 = vmatpush1.msra.mxu0 0.0
      %1870 = vmatprep.subr.mxu0 0.0
      %1871 = vmatpush1.msra.mxu0 0.0
      %1872 = vmatprep.subr.mxu0 0.0
      %1873 = vmatpush1.msra.mxu0 0.0
      %1874 = vmatprep.subr.mxu0 0.0
      %1875 = vmatpush1.msra.mxu0 0.0
      %1876 = vmatprep.subr.mxu0 0.0
      %1877 = vmatpush1.msra.mxu0 0.0
      %1878 = vmatprep.subr.mxu0 0.0
      %1879 = vmatpush1.msra.mxu0 0.0
      %1880 = vmatprep.subr.mxu0 0.0
      %1881 = vmatpush1.msra.mxu0 0.0
      %1882 = vmatprep.subr.mxu0 0.0
      %1883 = vmatpush1.msra.mxu0 0.0
      %1884 = vmatprep.subr.mxu0 0.0
      %1885 = vmatpush1.msra.mxu0 0.0
      %1886 = vmatprep.subr.mxu0 0.0
      %1887 = vmatpush1.msra.mxu0 0.0
      %1888 = vmatprep.subr.mxu0 0.0
      %1889 = vmatpush1.msra.mxu0 0.0
      %1890 = vmatprep.subr.mxu0 0.0
      %1891 = vmatpush1.msra.mxu0 0.0
      %1892 = vmatprep.subr.mxu0 0.0
      %1893 = vmatpush1.msra.mxu0 0.0
      %1894 = vmatprep.subr.mxu0 0.0
      %1895 = vmatpush1.msra.mxu0 %v1850
      %1896 = vmatprep.subr.mxu0 0.0
      %1897 = vmatpush1.msra.mxu0 %v1849
      %1898 = vmatprep.subr.mxu0 0.0
      %1899 = vmatpush2.msra.mxu0 0.0
      %1900 = vmatprep.subr.mxu0 0.0
      %1901 = vmatpush2.msra.mxu0 0.0
      %1902 = vmatprep.subr.mxu0 0.0
      %1903 = vmatpush2.msra.mxu0 0.0
      %1904 = vmatprep.subr.mxu0 0.0
      %1905 = vmatpush2.msra.mxu0 0.0
      %1906 = vmatprep.subr.mxu0 0.0
      %1907 = vmatpush2.msra.mxu0 0.0
      %1908 = vmatprep.subr.mxu0 0.0
      %1909 = vmatpush2.msra.mxu0 0.0
      %1910 = vmatprep.subr.mxu0 0.0
      %1911 = vmatpush2.msra.mxu0 0.0
      %1912 = vmatprep.subr.mxu0 0.0
      %1913 = vmatpush2.msra.mxu0 0.0
      %1914 = vmatprep.subr.mxu0 0.0
      %1915 = vmatpush2.msra.mxu0 0.0
      %1916 = vmatprep.subr.mxu0 0.0
      %1917 = vmatpush2.msra.mxu0 0.0
      %1918 = vmatprep.subr.mxu0 0.0
      %1919 = vmatpush2.msra.mxu0 0.0
      %1920 = vmatprep.subr.mxu0 0.0
      %1921 = vmatpush2.msra.mxu0 0.0
      %1922 = vmatprep.subr.mxu0 0.0
      %1923 = vmatpush2.msra.mxu0 0.0
      %1924 = vmatprep.subr.mxu0 0.0
      %1925 = vmatpush2.msra.mxu0 0.0
      %1926 = vmatprep.subr.mxu0 0.0
      %1927 = vmatpush2.msra.mxu0 0.0
      %1928 = vmatprep.subr.mxu0 0.0
      %1929 = vmatpush2.msra.mxu0 0.0
      %1930 = vmatprep.mubr.f32.mxu0 0.0
      %1931 = vmatmul.mubr.f32.gmra.mxu0 %v1852
      %v1932 = vpop.f32.mrf.mxu0
      %v1933 = vadd.f32 0.0, %v1932
      %v1934 = vpop.f32.mrf.mxu0
      %1935 = vmatprep.mubr.f32.mxu0 0.0
      %1936 = vmatmul.mubr.f32.gmra.mxu0 %v1855
      %v1937 = vpop.f32.mrf.mxu0
      %v1938 = vadd.f32 0.0, %v1937
      %v1939 = vpop.f32.mrf.mxu0
      %1940 = vmatprep.mubr.f32.mxu0 0.0
      %1941 = vmatmul.mubr.f32.gmra.mxu0 %v1858
      %v1942 = vpop.f32.mrf.mxu0
      %v1943 = vadd.f32 0.0, %v1942
      %v1944 = vpop.f32.mrf.mxu0
      %1945 = vmatprep.mubr.f32.mxu0 0.0
      %1946 = vmatmul.mubr.f32.gmra.mxu0 %v1861
      %v1947 = vpop.f32.mrf.mxu0
      %v1948 = vadd.f32 0.0, %v1947
      %v1949 = vpop.f32.mrf.mxu0
      %1950 = vmatprep.mubr.f32.mxu0 0.0
      %1951 = vmatmul.mubr.f32.gmra.mxu0 %v1864
      %v1952 = vpop.f32.mrf.mxu0
      %v1953 = vadd.f32 0.0, %v1952
      %v1954 = vpop.f32.mrf.mxu0
      %1955 = vdwg.mxu0
      %v1956 = vadd.f32 %v1838, %v1933
      %v1957 = vadd.f32 %v1839, %v1938
      %v1958 = vadd.f32 %v1840, %v1943
      %v1959 = vadd.f32 %v1841, %v1948
      %v1960 = vadd.f32 %v1842, %v1953
      %v1961 = vld [vmem:[#allocation3 + $0x10] sm:$0xff]
      %v1962 = vld [vmem:[#allocation3 + $0x18] sm:$0xff]
      %v1963 = vld [vmem:[#allocation3 + $0x20] sm:$0xff]
      %v1964 = vld [vmem:[#allocation3 + $0x28] sm:$0xff]
      %v1965 = vld [vmem:[#allocation3 + $0x30] sm:$0xff]
      %s1966 = scalar_lea.vmem %s4, 64
      %v1967 = vld [vmem:[%s1966] sm:$0xff]
      %v1968 = vld [vmem:[%s1966 + $0x8] sm:$0xff]
      %v1970 = vsel %vm273, %v1961, 0
      %v1973 = vsel %vm273, %v1962, 0
      %v1976 = vsel %vm273, %v1963, 0
      %v1979 = vsel %vm273, %v1964, 0
      %v1982 = vsel %vm273, %v1965, 0
      %1984 = vmatprep.subr.mxu0 0.0
      %1985 = vmatpush1.msra.mxu0 0.0
      %1986 = vmatprep.subr.mxu0 0.0
      %1987 = vmatpush1.msra.mxu0 0.0
      %1988 = vmatprep.subr.mxu0 0.0
      %1989 = vmatpush1.msra.mxu0 0.0
      %1990 = vmatprep.subr.mxu0 0.0
      %1991 = vmatpush1.msra.mxu0 0.0
      %1992 = vmatprep.subr.mxu0 0.0
      %1993 = vmatpush1.msra.mxu0 0.0
      %1994 = vmatprep.subr.mxu0 0.0
      %1995 = vmatpush1.msra.mxu0 0.0
      %1996 = vmatprep.subr.mxu0 0.0
      %1997 = vmatpush1.msra.mxu0 0.0
      %1998 = vmatprep.subr.mxu0 0.0
      %1999 = vmatpush1.msra.mxu0 0.0
      %2000 = vmatprep.subr.mxu0 0.0
      %2001 = vmatpush1.msra.mxu0 0.0
      %2002 = vmatprep.subr.mxu0 0.0
      %2003 = vmatpush1.msra.mxu0 0.0
      %2004 = vmatprep.subr.mxu0 0.0
      %2005 = vmatpush1.msra.mxu0 0.0
      %2006 = vmatprep.subr.mxu0 0.0
      %2007 = vmatpush1.msra.mxu0 0.0
      %2008 = vmatprep.subr.mxu0 0.0
      %2009 = vmatpush1.msra.mxu0 0.0
      %2010 = vmatprep.subr.mxu0 0.0
      %2011 = vmatpush1.msra.mxu0 0.0
      %2012 = vmatprep.subr.mxu0 0.0
      %2013 = vmatpush1.msra.mxu0 %v1968
      %2014 = vmatprep.subr.mxu0 0.0
      %2015 = vmatpush1.msra.mxu0 %v1967
      %2016 = vmatprep.subr.mxu0 0.0
      %2017 = vmatpush2.msra.mxu0 0.0
      %2018 = vmatprep.subr.mxu0 0.0
      %2019 = vmatpush2.msra.mxu0 0.0
      %2020 = vmatprep.subr.mxu0 0.0
      %2021 = vmatpush2.msra.mxu0 0.0
      %2022 = vmatprep.subr.mxu0 0.0
      %2023 = vmatpush2.msra.mxu0 0.0
      %2024 = vmatprep.subr.mxu0 0.0
      %2025 = vmatpush2.msra.mxu0 0.0
      %2026 = vmatprep.subr.mxu0 0.0
      %2027 = vmatpush2.msra.mxu0 0.0
      %2028 = vmatprep.subr.mxu0 0.0
      %2029 = vmatpush2.msra.mxu0 0.0
      %2030 = vmatprep.subr.mxu0 0.0
      %2031 = vmatpush2.msra.mxu0 0.0
      %2032 = vmatprep.subr.mxu0 0.0
      %2033 = vmatpush2.msra.mxu0 0.0
      %2034 = vmatprep.subr.mxu0 0.0
      %2035 = vmatpush2.msra.mxu0 0.0
      %2036 = vmatprep.subr.mxu0 0.0
      %2037 = vmatpush2.msra.mxu0 0.0
      %2038 = vmatprep.subr.mxu0 0.0
      %2039 = vmatpush2.msra.mxu0 0.0
      %2040 = vmatprep.subr.mxu0 0.0
      %2041 = vmatpush2.msra.mxu0 0.0
      %2042 = vmatprep.subr.mxu0 0.0
      %2043 = vmatpush2.msra.mxu0 0.0
      %2044 = vmatprep.subr.mxu0 0.0
      %2045 = vmatpush2.msra.mxu0 0.0
      %2046 = vmatprep.subr.mxu0 0.0
      %2047 = vmatpush2.msra.mxu0 0.0
      %2048 = vmatprep.mubr.f32.mxu0 0.0
      %2049 = vmatmul.mubr.f32.gmra.mxu0 %v1970
      %v2050 = vpop.f32.mrf.mxu0
      %v2051 = vadd.f32 0.0, %v2050
      %v2052 = vpop.f32.mrf.mxu0
      %2053 = vmatprep.mubr.f32.mxu0 0.0
      %2054 = vmatmul.mubr.f32.gmra.mxu0 %v1973
      %v2055 = vpop.f32.mrf.mxu0
      %v2056 = vadd.f32 0.0, %v2055
      %v2057 = vpop.f32.mrf.mxu0
      %2058 = vmatprep.mubr.f32.mxu0 0.0
      %2059 = vmatmul.mubr.f32.gmra.mxu0 %v1976
      %v2060 = vpop.f32.mrf.mxu0
      %v2061 = vadd.f32 0.0, %v2060
      %v2062 = vpop.f32.mrf.mxu0
      %2063 = vmatprep.mubr.f32.mxu0 0.0
      %2064 = vmatmul.mubr.f32.gmra.mxu0 %v1979
      %v2065 = vpop.f32.mrf.mxu0
      %v2066 = vadd.f32 0.0, %v2065
      %v2067 = vpop.f32.mrf.mxu0
      %2068 = vmatprep.mubr.f32.mxu0 0.0
      %2069 = vmatmul.mubr.f32.gmra.mxu0 %v1982
      %v2070 = vpop.f32.mrf.mxu0
      %v2071 = vadd.f32 0.0, %v2070
      %v2072 = vpop.f32.mrf.mxu0
      %2073 = vdwg.mxu0
      %v2074 = vadd.f32 %v1956, %v2051
      %v2075 = vadd.f32 %v1957, %v2056
      %v2076 = vadd.f32 %v1958, %v2061
      %v2077 = vadd.f32 %v1959, %v2066
      %v2078 = vadd.f32 %v1960, %v2071
      %v2079 = vld [vmem:[#allocation3 + $0x11] sm:$0xff]
      %v2080 = vld [vmem:[#allocation3 + $0x19] sm:$0xff]
      %v2081 = vld [vmem:[#allocation3 + $0x21] sm:$0xff]
      %v2082 = vld [vmem:[#allocation3 + $0x29] sm:$0xff]
      %v2083 = vld [vmem:[#allocation3 + $0x31] sm:$0xff]
      %s2084 = scalar_lea.vmem %s4, 80
      %v2085 = vld [vmem:[%s2084] sm:$0xff]
      %v2086 = vld [vmem:[%s2084 + $0x8] sm:$0xff]
      %v2088 = vsel %vm273, %v2079, 0
      %v2091 = vsel %vm273, %v2080, 0
      %v2094 = vsel %vm273, %v2081, 0
      %v2097 = vsel %vm273, %v2082, 0
      %v2100 = vsel %vm273, %v2083, 0
      %2102 = vmatprep.subr.mxu0 0.0
      %2103 = vmatpush1.msra.mxu0 0.0
      %2104 = vmatprep.subr.mxu0 0.0
      %2105 = vmatpush1.msra.mxu0 0.0
      %2106 = vmatprep.subr.mxu0 0.0
      %2107 = vmatpush1.msra.mxu0 0.0
      %2108 = vmatprep.subr.mxu0 0.0
      %2109 = vmatpush1.msra.mxu0 0.0
      %2110 = vmatprep.subr.mxu0 0.0
      %2111 = vmatpush1.msra.mxu0 0.0
      %2112 = vmatprep.subr.mxu0 0.0
      %2113 = vmatpush1.msra.mxu0 0.0
      %2114 = vmatprep.subr.mxu0 0.0
      %2115 = vmatpush1.msra.mxu0 0.0
      %2116 = vmatprep.subr.mxu0 0.0
      %2117 = vmatpush1.msra.mxu0 0.0
      %2118 = vmatprep.subr.mxu0 0.0
      %2119 = vmatpush1.msra.mxu0 0.0
      %2120 = vmatprep.subr.mxu0 0.0
      %2121 = vmatpush1.msra.mxu0 0.0
      %2122 = vmatprep.subr.mxu0 0.0
      %2123 = vmatpush1.msra.mxu0 0.0
      %2124 = vmatprep.subr.mxu0 0.0
      %2125 = vmatpush1.msra.mxu0 0.0
      %2126 = vmatprep.subr.mxu0 0.0
      %2127 = vmatpush1.msra.mxu0 0.0
      %2128 = vmatprep.subr.mxu0 0.0
      %2129 = vmatpush1.msra.mxu0 0.0
      %2130 = vmatprep.subr.mxu0 0.0
      %2131 = vmatpush1.msra.mxu0 %v2086
      %2132 = vmatprep.subr.mxu0 0.0
      %2133 = vmatpush1.msra.mxu0 %v2085
      %2134 = vmatprep.subr.mxu0 0.0
      %2135 = vmatpush2.msra.mxu0 0.0
      %2136 = vmatprep.subr.mxu0 0.0
      %2137 = vmatpush2.msra.mxu0 0.0
      %2138 = vmatprep.subr.mxu0 0.0
      %2139 = vmatpush2.msra.mxu0 0.0
      %2140 = vmatprep.subr.mxu0 0.0
      %2141 = vmatpush2.msra.mxu0 0.0
      %2142 = vmatprep.subr.mxu0 0.0
      %2143 = vmatpush2.msra.mxu0 0.0
      %2144 = vmatprep.subr.mxu0 0.0
      %2145 = vmatpush2.msra.mxu0 0.0
      %2146 = vmatprep.subr.mxu0 0.0
      %2147 = vmatpush2.msra.mxu0 0.0
      %2148 = vmatprep.subr.mxu0 0.0
      %2149 = vmatpush2.msra.mxu0 0.0
      %2150 = vmatprep.subr.mxu0 0.0
      %2151 = vmatpush2.msra.mxu0 0.0
      %2152 = vmatprep.subr.mxu0 0.0
      %2153 = vmatpush2.msra.mxu0 0.0
      %2154 = vmatprep.subr.mxu0 0.0
      %2155 = vmatpush2.msra.mxu0 0.0
      %2156 = vmatprep.subr.mxu0 0.0
      %2157 = vmatpush2.msra.mxu0 0.0
      %2158 = vmatprep.subr.mxu0 0.0
      %2159 = vmatpush2.msra.mxu0 0.0
      %2160 = vmatprep.subr.mxu0 0.0
      %2161 = vmatpush2.msra.mxu0 0.0
      %2162 = vmatprep.subr.mxu0 0.0
      %2163 = vmatpush2.msra.mxu0 0.0
      %2164 = vmatprep.subr.mxu0 0.0
      %2165 = vmatpush2.msra.mxu0 0.0
      %2166 = vmatprep.mubr.f32.mxu0 0.0
      %2167 = vmatmul.mubr.f32.gmra.mxu0 %v2088
      %v2168 = vpop.f32.mrf.mxu0
      %v2169 = vadd.f32 0.0, %v2168
      %v2170 = vpop.f32.mrf.mxu0
      %2171 = vmatprep.mubr.f32.mxu0 0.0
      %2172 = vmatmul.mubr.f32.gmra.mxu0 %v2091
      %v2173 = vpop.f32.mrf.mxu0
      %v2174 = vadd.f32 0.0, %v2173
      %v2175 = vpop.f32.mrf.mxu0
      %2176 = vmatprep.mubr.f32.mxu0 0.0
      %2177 = vmatmul.mubr.f32.gmra.mxu0 %v2094
      %v2178 = vpop.f32.mrf.mxu0
      %v2179 = vadd.f32 0.0, %v2178
      %v2180 = vpop.f32.mrf.mxu0
      %2181 = vmatprep.mubr.f32.mxu0 0.0
      %2182 = vmatmul.mubr.f32.gmra.mxu0 %v2097
      %v2183 = vpop.f32.mrf.mxu0
      %v2184 = vadd.f32 0.0, %v2183
      %v2185 = vpop.f32.mrf.mxu0
      %2186 = vmatprep.mubr.f32.mxu0 0.0
      %2187 = vmatmul.mubr.f32.gmra.mxu0 %v2100
      %v2188 = vpop.f32.mrf.mxu0
      %v2189 = vadd.f32 0.0, %v2188
      %v2190 = vpop.f32.mrf.mxu0
      %2191 = vdwg.mxu0
      %v2192 = vadd.f32 %v2074, %v2169
      %v2193 = vadd.f32 %v2075, %v2174
      %v2194 = vadd.f32 %v2076, %v2179
      %v2195 = vadd.f32 %v2077, %v2184
      %v2196 = vadd.f32 %v2078, %v2189
      %v2197 = vld [vmem:[#allocation3 + $0x17] sm:$0xff]
      %v2198 = vld [vmem:[#allocation3 + $0x1f] sm:$0xff]
      %v2199 = vld [vmem:[#allocation3 + $0x27] sm:$0xff]
      %v2200 = vld [vmem:[#allocation3 + $0x2f] sm:$0xff]
      %v2201 = vld [vmem:[#allocation3 + $0x37] sm:$0xff]
      %s2202 = scalar_lea.vmem %s4, 96
      %v2203 = vld [vmem:[%s2202] sm:$0xff]
      %v2204 = vld [vmem:[%s2202 + $0x8] sm:$0xff]
      %v2206 = vsel %vm273, %v2197, 0
      %v2209 = vsel %vm273, %v2198, 0
      %v2212 = vsel %vm273, %v2199, 0
      %v2215 = vsel %vm273, %v2200, 0
      %v2218 = vsel %vm273, %v2201, 0
      %2220 = vmatprep.subr.mxu0 0.0
      %2221 = vmatpush1.msra.mxu0 0.0
      %2222 = vmatprep.subr.mxu0 0.0
      %2223 = vmatpush1.msra.mxu0 0.0
      %2224 = vmatprep.subr.mxu0 0.0
      %2225 = vmatpush1.msra.mxu0 0.0
      %2226 = vmatprep.subr.mxu0 0.0
      %2227 = vmatpush1.msra.mxu0 0.0
      %2228 = vmatprep.subr.mxu0 0.0
      %2229 = vmatpush1.msra.mxu0 0.0
      %2230 = vmatprep.subr.mxu0 0.0
      %2231 = vmatpush1.msra.mxu0 0.0
      %2232 = vmatprep.subr.mxu0 0.0
      %2233 = vmatpush1.msra.mxu0 0.0
      %2234 = vmatprep.subr.mxu0 0.0
      %2235 = vmatpush1.msra.mxu0 0.0
      %2236 = vmatprep.subr.mxu0 0.0
      %2237 = vmatpush1.msra.mxu0 0.0
      %2238 = vmatprep.subr.mxu0 0.0
      %2239 = vmatpush1.msra.mxu0 0.0
      %2240 = vmatprep.subr.mxu0 0.0
      %2241 = vmatpush1.msra.mxu0 0.0
      %2242 = vmatprep.subr.mxu0 0.0
      %2243 = vmatpush1.msra.mxu0 0.0
      %2244 = vmatprep.subr.mxu0 0.0
      %2245 = vmatpush1.msra.mxu0 0.0
      %2246 = vmatprep.subr.mxu0 0.0
      %2247 = vmatpush1.msra.mxu0 0.0
      %2248 = vmatprep.subr.mxu0 0.0
      %2249 = vmatpush1.msra.mxu0 %v2204
      %2250 = vmatprep.subr.mxu0 0.0
      %2251 = vmatpush1.msra.mxu0 %v2203
      %2252 = vmatprep.subr.mxu0 0.0
      %2253 = vmatpush2.msra.mxu0 0.0
      %2254 = vmatprep.subr.mxu0 0.0
      %2255 = vmatpush2.msra.mxu0 0.0
      %2256 = vmatprep.subr.mxu0 0.0
      %2257 = vmatpush2.msra.mxu0 0.0
      %2258 = vmatprep.subr.mxu0 0.0
      %2259 = vmatpush2.msra.mxu0 0.0
      %2260 = vmatprep.subr.mxu0 0.0
      %2261 = vmatpush2.msra.mxu0 0.0
      %2262 = vmatprep.subr.mxu0 0.0
      %2263 = vmatpush2.msra.mxu0 0.0
      %2264 = vmatprep.subr.mxu0 0.0
      %2265 = vmatpush2.msra.mxu0 0.0
      %2266 = vmatprep.subr.mxu0 0.0
      %2267 = vmatpush2.msra.mxu0 0.0
      %2268 = vmatprep.subr.mxu0 0.0
      %2269 = vmatpush2.msra.mxu0 0.0
      %2270 = vmatprep.subr.mxu0 0.0
      %2271 = vmatpush2.msra.mxu0 0.0
      %2272 = vmatprep.subr.mxu0 0.0
      %2273 = vmatpush2.msra.mxu0 0.0
      %2274 = vmatprep.subr.mxu0 0.0
      %2275 = vmatpush2.msra.mxu0 0.0
      %2276 = vmatprep.subr.mxu0 0.0
      %2277 = vmatpush2.msra.mxu0 0.0
      %2278 = vmatprep.subr.mxu0 0.0
      %2279 = vmatpush2.msra.mxu0 0.0
      %2280 = vmatprep.subr.mxu0 0.0
      %2281 = vmatpush2.msra.mxu0 0.0
      %2282 = vmatprep.subr.mxu0 0.0
      %2283 = vmatpush2.msra.mxu0 0.0
      %2284 = vmatprep.mubr.f32.mxu0 0.0
      %2285 = vmatmul.mubr.f32.gmra.mxu0 %v2206
      %v2286 = vpop.f32.mrf.mxu0
      %v2287 = vadd.f32 0.0, %v2286
      %v2288 = vpop.f32.mrf.mxu0
      %2289 = vmatprep.mubr.f32.mxu0 0.0
      %2290 = vmatmul.mubr.f32.gmra.mxu0 %v2209
      %v2291 = vpop.f32.mrf.mxu0
      %v2292 = vadd.f32 0.0, %v2291
      %v2293 = vpop.f32.mrf.mxu0
      %2294 = vmatprep.mubr.f32.mxu0 0.0
      %2295 = vmatmul.mubr.f32.gmra.mxu0 %v2212
      %v2296 = vpop.f32.mrf.mxu0
      %v2297 = vadd.f32 0.0, %v2296
      %v2298 = vpop.f32.mrf.mxu0
      %2299 = vmatprep.mubr.f32.mxu0 0.0
      %2300 = vmatmul.mubr.f32.gmra.mxu0 %v2215
      %v2301 = vpop.f32.mrf.mxu0
      %v2302 = vadd.f32 0.0, %v2301
      %v2303 = vpop.f32.mrf.mxu0
      %2304 = vmatprep.mubr.f32.mxu0 0.0
      %2305 = vmatmul.mubr.f32.gmra.mxu0 %v2218
      %v2306 = vpop.f32.mrf.mxu0
      %v2307 = vadd.f32 0.0, %v2306
      %v2308 = vpop.f32.mrf.mxu0
      %2309 = vdwg.mxu0
      %v2310 = vadd.f32 %v2192, %v2287
      %v2311 = vadd.f32 %v2193, %v2292
      %v2312 = vadd.f32 %v2194, %v2297
      %v2313 = vadd.f32 %v2195, %v2302
      %v2314 = vadd.f32 %v2196, %v2307
      %v2315 = vld [vmem:[#allocation3 + $0x18] sm:$0xff]
      %v2316 = vld [vmem:[#allocation3 + $0x20] sm:$0xff]
      %v2317 = vld [vmem:[#allocation3 + $0x28] sm:$0xff]
      %v2318 = vld [vmem:[#allocation3 + $0x30] sm:$0xff]
      %v2319 = vld [vmem:[#allocation3 + $0x38] sm:$0xff]
      %s2320 = scalar_lea.vmem %s4, 112
      %v2321 = vld [vmem:[%s2320] sm:$0xff]
      %v2322 = vld [vmem:[%s2320 + $0x8] sm:$0xff]
      %v2324 = vsel %vm273, %v2315, 0
      %v2327 = vsel %vm273, %v2316, 0
      %v2330 = vsel %vm273, %v2317, 0
      %v2333 = vsel %vm273, %v2318, 0
      %v2336 = vsel %vm273, %v2319, 0
      %2338 = vmatprep.subr.mxu0 0.0
      %2339 = vmatpush1.msra.mxu0 0.0
      %2340 = vmatprep.subr.mxu0 0.0
      %2341 = vmatpush1.msra.mxu0 0.0
      %2342 = vmatprep.subr.mxu0 0.0
      %2343 = vmatpush1.msra.mxu0 0.0
      %2344 = vmatprep.subr.mxu0 0.0
      %2345 = vmatpush1.msra.mxu0 0.0
      %2346 = vmatprep.subr.mxu0 0.0
      %2347 = vmatpush1.msra.mxu0 0.0
      %2348 = vmatprep.subr.mxu0 0.0
      %2349 = vmatpush1.msra.mxu0 0.0
      %2350 = vmatprep.subr.mxu0 0.0
      %2351 = vmatpush1.msra.mxu0 0.0
      %2352 = vmatprep.subr.mxu0 0.0
      %2353 = vmatpush1.msra.mxu0 0.0
      %2354 = vmatprep.subr.mxu0 0.0
      %2355 = vmatpush1.msra.mxu0 0.0
      %2356 = vmatprep.subr.mxu0 0.0
      %2357 = vmatpush1.msra.mxu0 0.0
      %2358 = vmatprep.subr.mxu0 0.0
      %2359 = vmatpush1.msra.mxu0 0.0
      %2360 = vmatprep.subr.mxu0 0.0
      %2361 = vmatpush1.msra.mxu0 0.0
      %2362 = vmatprep.subr.mxu0 0.0
      %2363 = vmatpush1.msra.mxu0 0.0
      %2364 = vmatprep.subr.mxu0 0.0
      %2365 = vmatpush1.msra.mxu0 0.0
      %2366 = vmatprep.subr.mxu0 0.0
      %2367 = vmatpush1.msra.mxu0 %v2322
      %2368 = vmatprep.subr.mxu0 0.0
      %2369 = vmatpush1.msra.mxu0 %v2321
      %2370 = vmatprep.subr.mxu0 0.0
      %2371 = vmatpush2.msra.mxu0 0.0
      %2372 = vmatprep.subr.mxu0 0.0
      %2373 = vmatpush2.msra.mxu0 0.0
      %2374 = vmatprep.subr.mxu0 0.0
      %2375 = vmatpush2.msra.mxu0 0.0
      %2376 = vmatprep.subr.mxu0 0.0
      %2377 = vmatpush2.msra.mxu0 0.0
      %2378 = vmatprep.subr.mxu0 0.0
      %2379 = vmatpush2.msra.mxu0 0.0
      %2380 = vmatprep.subr.mxu0 0.0
      %2381 = vmatpush2.msra.mxu0 0.0
      %2382 = vmatprep.subr.mxu0 0.0
      %2383 = vmatpush2.msra.mxu0 0.0
      %2384 = vmatprep.subr.mxu0 0.0
      %2385 = vmatpush2.msra.mxu0 0.0
      %2386 = vmatprep.subr.mxu0 0.0
      %2387 = vmatpush2.msra.mxu0 0.0
      %2388 = vmatprep.subr.mxu0 0.0
      %2389 = vmatpush2.msra.mxu0 0.0
      %2390 = vmatprep.subr.mxu0 0.0
      %2391 = vmatpush2.msra.mxu0 0.0
      %2392 = vmatprep.subr.mxu0 0.0
      %2393 = vmatpush2.msra.mxu0 0.0
      %2394 = vmatprep.subr.mxu0 0.0
      %2395 = vmatpush2.msra.mxu0 0.0
      %2396 = vmatprep.subr.mxu0 0.0
      %2397 = vmatpush2.msra.mxu0 0.0
      %2398 = vmatprep.subr.mxu0 0.0
      %2399 = vmatpush2.msra.mxu0 0.0
      %2400 = vmatprep.subr.mxu0 0.0
      %2401 = vmatpush2.msra.mxu0 0.0
      %2402 = vmatprep.mubr.f32.mxu0 0.0
      %2403 = vmatmul.mubr.f32.gmra.mxu0 %v2324
      %v2404 = vpop.f32.mrf.mxu0
      %v2405 = vadd.f32 0.0, %v2404
      %v2406 = vpop.f32.mrf.mxu0
      %2407 = vmatprep.mubr.f32.mxu0 0.0
      %2408 = vmatmul.mubr.f32.gmra.mxu0 %v2327
      %v2409 = vpop.f32.mrf.mxu0
      %v2410 = vadd.f32 0.0, %v2409
      %v2411 = vpop.f32.mrf.mxu0
      %2412 = vmatprep.mubr.f32.mxu0 0.0
      %2413 = vmatmul.mubr.f32.gmra.mxu0 %v2330
      %v2414 = vpop.f32.mrf.mxu0
      %v2415 = vadd.f32 0.0, %v2414
      %v2416 = vpop.f32.mrf.mxu0
      %2417 = vmatprep.mubr.f32.mxu0 0.0
      %2418 = vmatmul.mubr.f32.gmra.mxu0 %v2333
      %v2419 = vpop.f32.mrf.mxu0
      %v2420 = vadd.f32 0.0, %v2419
      %v2421 = vpop.f32.mrf.mxu0
      %2422 = vmatprep.mubr.f32.mxu0 0.0
      %2423 = vmatmul.mubr.f32.gmra.mxu0 %v2336
      %v2424 = vpop.f32.mrf.mxu0
      %v2425 = vadd.f32 0.0, %v2424
      %v2426 = vpop.f32.mrf.mxu0
      %2427 = vdwg.mxu0
      %v2428 = vadd.f32 %v2310, %v2405
      %v2429 = vadd.f32 %v2311, %v2410
      %v2430 = vadd.f32 %v2312, %v2415
      %v2431 = vadd.f32 %v2313, %v2420
      %v2432 = vadd.f32 %v2314, %v2425
      %v2433 = vld [vmem:[#allocation3 + $0x19] sm:$0xff]
      %v2434 = vld [vmem:[#allocation3 + $0x21] sm:$0xff]
      %v2435 = vld [vmem:[#allocation3 + $0x29] sm:$0xff]
      %v2436 = vld [vmem:[#allocation3 + $0x31] sm:$0xff]
      %v2437 = vld [vmem:[#allocation3 + $0x39] sm:$0xff]
      %s2438 = scalar_lea.vmem %s4, 128
      %v2439 = vld [vmem:[%s2438] sm:$0xff]
      %v2440 = vld [vmem:[%s2438 + $0x8] sm:$0xff]
      %v2442 = vsel %vm273, %v2433, 0
      %v2445 = vsel %vm273, %v2434, 0
      %v2448 = vsel %vm273, %v2435, 0
      %v2451 = vsel %vm273, %v2436, 0
      %v2454 = vsel %vm273, %v2437, 0
      %2456 = vmatprep.subr.mxu0 0.0
      %2457 = vmatpush1.msra.mxu0 0.0
      %2458 = vmatprep.subr.mxu0 0.0
      %2459 = vmatpush1.msra.mxu0 0.0
      %2460 = vmatprep.subr.mxu0 0.0
      %2461 = vmatpush1.msra.mxu0 0.0
      %2462 = vmatprep.subr.mxu0 0.0
      %2463 = vmatpush1.msra.mxu0 0.0
      %2464 = vmatprep.subr.mxu0 0.0
      %2465 = vmatpush1.msra.mxu0 0.0
      %2466 = vmatprep.subr.mxu0 0.0
      %2467 = vmatpush1.msra.mxu0 0.0
      %2468 = vmatprep.subr.mxu0 0.0
      %2469 = vmatpush1.msra.mxu0 0.0
      %2470 = vmatprep.subr.mxu0 0.0
      %2471 = vmatpush1.msra.mxu0 0.0
      %2472 = vmatprep.subr.mxu0 0.0
      %2473 = vmatpush1.msra.mxu0 0.0
      %2474 = vmatprep.subr.mxu0 0.0
      %2475 = vmatpush1.msra.mxu0 0.0
      %2476 = vmatprep.subr.mxu0 0.0
      %2477 = vmatpush1.msra.mxu0 0.0
      %2478 = vmatprep.subr.mxu0 0.0
      %2479 = vmatpush1.msra.mxu0 0.0
      %2480 = vmatprep.subr.mxu0 0.0
      %2481 = vmatpush1.msra.mxu0 0.0
      %2482 = vmatprep.subr.mxu0 0.0
      %2483 = vmatpush1.msra.mxu0 0.0
      %2484 = vmatprep.subr.mxu0 0.0
      %2485 = vmatpush1.msra.mxu0 %v2440
      %2486 = vmatprep.subr.mxu0 0.0
      %2487 = vmatpush1.msra.mxu0 %v2439
      %2488 = vmatprep.subr.mxu0 0.0
      %2489 = vmatpush2.msra.mxu0 0.0
      %2490 = vmatprep.subr.mxu0 0.0
      %2491 = vmatpush2.msra.mxu0 0.0
      %2492 = vmatprep.subr.mxu0 0.0
      %2493 = vmatpush2.msra.mxu0 0.0
      %2494 = vmatprep.subr.mxu0 0.0
      %2495 = vmatpush2.msra.mxu0 0.0
      %2496 = vmatprep.subr.mxu0 0.0
      %2497 = vmatpush2.msra.mxu0 0.0
      %2498 = vmatprep.subr.mxu0 0.0
      %2499 = vmatpush2.msra.mxu0 0.0
      %2500 = vmatprep.subr.mxu0 0.0
      %2501 = vmatpush2.msra.mxu0 0.0
      %2502 = vmatprep.subr.mxu0 0.0
      %2503 = vmatpush2.msra.mxu0 0.0
      %2504 = vmatprep.subr.mxu0 0.0
      %2505 = vmatpush2.msra.mxu0 0.0
      %2506 = vmatprep.subr.mxu0 0.0
      %2507 = vmatpush2.msra.mxu0 0.0
      %2508 = vmatprep.subr.mxu0 0.0
      %2509 = vmatpush2.msra.mxu0 0.0
      %2510 = vmatprep.subr.mxu0 0.0
      %2511 = vmatpush2.msra.mxu0 0.0
      %2512 = vmatprep.subr.mxu0 0.0
      %2513 = vmatpush2.msra.mxu0 0.0
      %2514 = vmatprep.subr.mxu0 0.0
      %2515 = vmatpush2.msra.mxu0 0.0
      %2516 = vmatprep.subr.mxu0 0.0
      %2517 = vmatpush2.msra.mxu0 0.0
      %2518 = vmatprep.subr.mxu0 0.0
      %2519 = vmatpush2.msra.mxu0 0.0
      %2520 = vmatprep.mubr.f32.mxu0 0.0
      %2521 = vmatmul.mubr.f32.gmra.mxu0 %v2442
      %v2522 = vpop.f32.mrf.mxu0
      %v2523 = vadd.f32 0.0, %v2522
      %v2524 = vpop.f32.mrf.mxu0
      %2525 = vmatprep.mubr.f32.mxu0 0.0
      %2526 = vmatmul.mubr.f32.gmra.mxu0 %v2445
      %v2527 = vpop.f32.mrf.mxu0
      %v2528 = vadd.f32 0.0, %v2527
      %v2529 = vpop.f32.mrf.mxu0
      %2530 = vmatprep.mubr.f32.mxu0 0.0
      %2531 = vmatmul.mubr.f32.gmra.mxu0 %v2448
      %v2532 = vpop.f32.mrf.mxu0
      %v2533 = vadd.f32 0.0, %v2532
      %v2534 = vpop.f32.mrf.mxu0
      %2535 = vmatprep.mubr.f32.mxu0 0.0
      %2536 = vmatmul.mubr.f32.gmra.mxu0 %v2451
      %v2537 = vpop.f32.mrf.mxu0
      %v2538 = vadd.f32 0.0, %v2537
      %v2539 = vpop.f32.mrf.mxu0
      %2540 = vmatprep.mubr.f32.mxu0 0.0
      %2541 = vmatmul.mubr.f32.gmra.mxu0 %v2454
      %v2542 = vpop.f32.mrf.mxu0
      %v2543 = vadd.f32 0.0, %v2542
      %v2544 = vpop.f32.mrf.mxu0
      %2545 = vdwg.mxu0
      %v2546 = vadd.f32 %v2428, %v2523
      %v2547 = vadd.f32 %v2429, %v2528
      %v2548 = vadd.f32 %v2430, %v2533
      %v2549 = vadd.f32 %v2431, %v2538
      %v2550 = vadd.f32 %v2432, %v2543
      %2551 = vrot.lane.b32.xlu0 %v1398, 64
      %v2552 = vpop.permute.xlu0 %2551
      %v2554 = vadd.f32 %v2546, %v2552
      %v2555 = vadd.f32 %v2547, %v2552
      %v2556 = vadd.f32 %v2548, %v2552
      %v2557 = vadd.f32 %v2549, %v2552
      %v2558 = vadd.f32 %v2550, %v2552
      %v2559 = vmax.f32 %v2554, 0.0
      %v2560 = vmax.f32 %v2555, 0.0
      %v2561 = vmax.f32 %v2556, 0.0
      %v2562 = vmax.f32 %v2557, 0.0
      %v2563 = vmax.f32 %v2558, 0.0
      %2569 = vrot.lane.b32.xlu0 %v2559, 124
      %v2570 = vpop.permute.xlu0 %2569
      %2571 = vrot.lane.b32.xlu0 %v2560, 124
      %v2572 = vpop.permute.xlu0 %2571
      %2573 = vrot.lane.b32.xlu0 %v2561, 124
      %v2574 = vpop.permute.xlu0 %2573
      %2575 = vrot.lane.b32.xlu0 %v2562, 124
      %v2576 = vpop.permute.xlu0 %2575
      %2577 = vrot.lane.b32.xlu0 %v2563, 124
      %v2578 = vpop.permute.xlu0 %2577
      %v2584 = vmax.f32 %v2559, %v2570
      %v2585 = vmax.f32 %v2560, %v2572
      %v2586 = vmax.f32 %v2561, %v2574
      %v2587 = vmax.f32 %v2562, %v2576
      %v2588 = vmax.f32 %v2563, %v2578
      %2594 = vrot.lane.b32.xlu0 %v2584, 120
      %v2595 = vpop.permute.xlu0 %2594
      %2596 = vrot.lane.b32.xlu0 %v2585, 120
      %v2597 = vpop.permute.xlu0 %2596
      %2598 = vrot.lane.b32.xlu0 %v2586, 120
      %v2599 = vpop.permute.xlu0 %2598
      %2600 = vrot.lane.b32.xlu0 %v2587, 120
      %v2601 = vpop.permute.xlu0 %2600
      %2602 = vrot.lane.b32.xlu0 %v2588, 120
      %v2603 = vpop.permute.xlu0 %2602
      %v2609 = vmax.f32 %v2584, %v2595
      %v2610 = vmax.f32 %v2585, %v2597
      %v2611 = vmax.f32 %v2586, %v2599
      %v2612 = vmax.f32 %v2587, %v2601
      %v2613 = vmax.f32 %v2588, %v2603
      %v2614 = vld [vmem:[%s264] sm:$0xff]
      %v2615 = vld [vmem:[%s264 + $0x8] sm:$0xff]
      %v2616 = vld [vmem:[%s264 + $0x10] sm:$0xff]
      %v2617 = vld [vmem:[%s264 + $0x18] sm:$0xff]
      %v2618 = vld [vmem:[%s264 + $0x20] sm:$0xff]
      %2620 = vset.pattern.permute.xlu0 0
      %2621 = vperm.xlu0 %2620, %v2614
      %v2622 = vpop.permute.xlu0 %2621
      %2625 = vset.pattern.permute.xlu0 0
      %2626 = vperm.xlu0 %2625, %v2615
      %v2627 = vpop.permute.xlu0 %2626
      %2630 = vset.pattern.permute.xlu0 0
      %2631 = vperm.xlu0 %2630, %v2616
      %v2632 = vpop.permute.xlu0 %2631
      %2635 = vset.pattern.permute.xlu0 0
      %2636 = vperm.xlu0 %2635, %v2617
      %v2637 = vpop.permute.xlu0 %2636
      %2640 = vset.pattern.permute.xlu0 0
      %2641 = vperm.xlu0 %2640, %v2618
      %v2642 = vpop.permute.xlu0 %2641
      %v2644 = vmul.f32 %v2609, %v2622
      %v2645 = vmul.f32 %v2610, %v2627
      %v2646 = vmul.f32 %v2611, %v2632
      %v2647 = vmul.f32 %v2612, %v2637
      %v2648 = vmul.f32 %v2613, %v2642
      %vm2649 = vcmask 31744
      %v2650 = vsel %vm2649, %v2644, 0.0
      %v2651 = vsel %vm2649, %v2645, 0.0
      %v2652 = vadd.f32 %v2650, %v2651
      %v2653 = vsel %vm2649, %v2646, 0.0
      %v2654 = vadd.f32 %v2652, %v2653
      %v2655 = vsel %vm2649, %v2647, 0.0
      %v2656 = vadd.f32 %v2654, %v2655
      %v2657 = vsel %vm2649, %v2648, 0.0
      %v2658 = vadd.f32 %v2656, %v2657
      %v2659 = vrot.slane %v2658, 4
      %v2660 = vadd.f32 %v2658, %v2659
      %v2661 = vrot.slane %v2660, 2
      %v2662 = vadd.f32 %v2660, %v2661
      %v2663 = vrot.slane %v2662, 1
      %v2664 = vadd.f32 %v2662, %v2663
      %v2665 = vsel %vm2649, %v2664, 0.0
      %2666 = vst [vmem:[%s267] sm:$0x1] %v2665
      %p2667 = scmp.lt.s32.totalorder %s17, 1
      %s2668 = scalar_select %p2667, %s17, 1
      %s2669 = scalar_lea.vmem %s6, %s2668
      // Predicated region
      $region45: #{attention_model_pallas.1} parent=43 // pred_check
        %p2670 = pneg %p171
      $region46: #{attention_model_pallas.1} parent=43 // pred_check_branch
        %2672 = sbr.rel (%p2670) target = $region48
      $region47: #{attention_model_pallas.1} parent=43 // pred_region
        _
      $region48: #{attention_model_pallas.1} parent=43 // pred_fallthru
        _
    $region44: #{attention_model_pallas.1} parent=5 // pred_fallthru
      _
    %p2673 = scmp.le.s32.totalorder 2, %s12
    // Predicated region
    $region49: #{attention_model_pallas.1} parent=5 // pred_check
      %p2674 = pneg %p2673
    $region50: #{attention_model_pallas.1} parent=5 // pred_check_branch
      %2676 = sbr.rel (%p2674) target = $region52
    $region51: #{attention_model_pallas.1} parent=5 // pred_region
      %s2677 = ssub.s32 %s12, 2
      // Predicated region
      $region53: #{attention_model_pallas.1} parent=51 // pred_check
        %p2678 = pneg %p177
      $region54: #{attention_model_pallas.1} parent=51 // pred_check_branch
        %2680 = sbr.rel (%p2678) target = $region56
      $region55: #{attention_model_pallas.1} parent=51 // pred_region
        %p2681 = scmp.lt.s32.totalorder %s18, 1
        %s2682 = scalar_select %p2681, %s18, 1
        %s2683 = scalar_lea.vmem %s6, %s2682
      $region56: #{attention_model_pallas.1} parent=51 // pred_fallthru
        _
    $region52: #{attention_model_pallas.1} parent=5 // pred_fallthru
      _
  $region6: #{attention_model_pallas.1} parent=0 // loop_footer
    %s16 = sadd.s32 1, %s12
  $region7: #{attention_model_pallas.1} parent=0 // loop_footer_branch
    %11 = sbr.rel target = $region3
  $region8: #{attention_model_pallas.1} parent=0 // loop_exit
    _

</llo_original>
